<compile_context>
chip_gen: v7x
topology: tpu7x:2x2x1
jax: 0.10.0
libtpu: 0.0.40
codegen_flags: <defaults>
</compile_context>

<pallas_src>
import functools

import jax
import jax.numpy as jnp
from jax.experimental import pallas as pl
from jax.experimental.pallas import tpu as pltpu

LN_EPS = 1e-5  # nn.LayerNorm default


def _ln_single_pass(v, gamma, beta):
    """Single-pass LayerNorm over the last axis (var = E[v^2] - mu^2, clamped)."""
    mu = jnp.mean(v, axis=-1, keepdims=True)
    var = jnp.maximum(jnp.mean(v * v, axis=-1, keepdims=True) - mu * mu, 0.0)
    return (v - mu) * jax.lax.rsqrt(var + LN_EPS) * gamma + beta


# -----------------------------------------------------------------------------
# Fused kernel: BB graphs per grid step.
#   adj_ref : [BB, N, N]       per-graph normalized adjacency (bf16)
#   x_ref   : [BB*N, in_dim]   node-feature slab (bf16, graphs stacked on rows)
#   w1fc_ref: [in_dim, 2*4H]   layer1 | fc1 weights fused column-wise (bf16)
#   ln_ref  : [2, 4H]          fc1 LayerNorm gamma (row 0) / beta (row 1), f32
#   w2_ref  : [2*4H, 4H]       layer2 weight (bf16)
#   w3_ref  : [4H, out_dim]    layer3 weight (bf16)
#   out_ref : [BB, out_dim]    per-graph sum_nodes readout (f32)
# -----------------------------------------------------------------------------
def gcn_kernel(adj_ref, x_ref, w1fc_ref, ln_ref, w2_ref, w3_ref, out_ref, *, bb, n):
    f32, bf16 = jnp.float32, jnp.bfloat16
    h4 = w2_ref.shape[1]          # hidden_dim * 4
    m = bb * n                    # rows in the node slab

    def bdot(a, b):               # bf16-operand matmul, f32 accumulation
        return jnp.dot(a.astype(bf16), b.astype(bf16), preferred_element_type=f32)

    adj = adj_ref[...]            # [bb, n, n] bf16
    x = x_ref[...]                # [m, in_dim] bf16

    def aggregate(h):
        """Per-graph A_hat @ h (batched over the bb graphs), then ReLU."""
        h3 = h.reshape(bb, n, h.shape[-1]).astype(bf16)
        a = jnp.einsum('gij,gjf->gif', adj, h3, preferred_element_type=f32)
        return jnp.maximum(a, 0.0).reshape(m, h.shape[-1])

    # layer1 & fc1 share the LHS: one [m, in_dim] x [in_dim, 2*4H] matmul,
    # then a static 128-lane split (no lane concat anywhere in the kernel).
    h01 = bdot(x, w1fc_ref[...])                                   # [m, 2*4H] f32
    x1 = aggregate(h01[:, :h4])                                    # relu(A @ (x W1))
    f1 = jnp.maximum(
        _ln_single_pass(h01[:, h4:], ln_ref[0:1, :], ln_ref[1:2, :]), 0.0)

    # layer2: concat([x1, f1], -1) @ W2 as a split-weight row-slice sum.
    x2 = aggregate(bdot(x1, w2_ref[:h4, :]) + bdot(f1, w2_ref[h4:, :]))

    # layer3
    x3 = aggregate(bdot(x2, w3_ref[...]))                          # [m, out_dim]

    # dgl.sum_nodes per graph via a block-structured selector matmul (MXU slot
    # instead of cross-sublane reductions; result is a lane-packed [bb, out]).
    rows = jax.lax.broadcasted_iota(jnp.int32, (bb, m), 0)
    cols = jax.lax.broadcasted_iota(jnp.int32, (bb, m), 1)
    sel = ((cols >= rows * n) & (cols < (rows + 1) * n)).astype(bf16)
    out_ref[...] = bdot(sel, x3)                                   # [bb, out_dim]


def gcn_forward(adj_hat, x, params, *, block_b=8):
    """Batched GCN forward.

    adj_hat: [B, N, N] dense normalized adjacency (GraphConv norm='both' with
             edge_weight, see normalize_adj); x: [B, N, in_dim]; returns
             [B, out_dim] sum_nodes readouts.
    """
    B, N, in_dim = x.shape
    out_dim = params["W3"].shape[1]

    bb = max(1, min(block_b, B))
    bp = pl.cdiv(B, bb) * bb
    if bp != B:
        # Padded graphs have all-zero adjacency/features.  Graphs never mix
        # (per-graph aggregation + per-graph selector readout), so padded rows
        # cannot contaminate real outputs; they are simply sliced off below.
        adj_hat = jnp.pad(adj_hat, ((0, bp - B), (0, 0), (0, 0)))
        x = jnp.pad(x, ((0, bp - B), (0, 0), (0, 0)))

    # bf16 matmul operands: halves HBM/DMA bytes, doubles MXU throughput.
    adj_b = adj_hat.astype(jnp.bfloat16)                            # [bp, N, N]
    x_flat = x.reshape(bp * N, in_dim).astype(jnp.bfloat16)         # [bp*N, in]
    w1fc = jnp.concatenate([params["W1"], params["Wfc"]], axis=1).astype(jnp.bfloat16)
    ln = jnp.stack([params["gamma"], params["beta"]], axis=0).astype(jnp.float32)
    w2 = params["W2"].astype(jnp.bfloat16)
    w3 = params["W3"].astype(jnp.bfloat16)
    weights = [w1fc, ln, w2, w3]

    def resident(a):
        # Constant block index across the grid: fetched once, stays in VMEM.
        return pl.BlockSpec(a.shape, lambda s, _nd=a.ndim: (0,) * _nd)

    out = pl.pallas_call(
        functools.partial(gcn_kernel, bb=bb, n=N),
        out_shape=jax.ShapeDtypeStruct((bp, out_dim), jnp.float32),
        grid=(bp // bb,),
        in_specs=[pl.BlockSpec((bb, N, N), lambda s: (s, 0, 0)),
                  pl.BlockSpec((bb * N, in_dim), lambda s: (s, 0))]
                 + [resident(a) for a in weights],
        out_specs=pl.BlockSpec((bb, out_dim), lambda s: (s, 0)),
        compiler_params=pltpu.CompilerParams(
            dimension_semantics=("parallel",)),
    )(adj_b, x_flat, *weights)
    return out[:B]


# -----------------------------------------------------------------------------
# Plain-JAX glue + reference
# -----------------------------------------------------------------------------
def normalize_adj(adj_bin, edge_w):
    """DGL GraphConv norm='both' with edge_weight, dense form.

    A_hat[i, j] = (A[i, j] * w[i, j]) / sqrt(d_in(i) * d_out(j)), unweighted
    degrees clamped to 1.
    """
    a_w = adj_bin * edge_w
    d_in = jnp.maximum(adj_bin.sum(axis=-1), 1.0)
    d_out = jnp.maximum(adj_bin.sum(axis=-2), 1.0)
    return (a_w * jax.lax.rsqrt(d_in)[..., :, None]
                * jax.lax.rsqrt(d_out)[..., None, :])


def layernorm_ref(v, gamma, beta, eps=LN_EPS):
    mu = jnp.mean(v, axis=-1, keepdims=True)
    var = jnp.mean((v - mu) ** 2, axis=-1, keepdims=True)
    return (v - mu) * jax.lax.rsqrt(var + eps) * gamma + beta


def gcn_ref(adj_hat, x, p, compute_dtype=jnp.float32):
    """Pure-JAX reference of GCN.forward.  `compute_dtype` sets the dot-operand
    precision so the bf16-operand kernel can also be checked at tight tolerance.
    """
    cd = compute_dtype
    prec = jax.lax.Precision.HIGHEST if cd == jnp.float32 else None

    def mm(a, b):
        return jnp.matmul(a.astype(cd), b.astype(cd),
                          preferred_element_type=jnp.float32, precision=prec)

    x1 = jax.nn.relu(mm(adj_hat, mm(x, p["W1"])))
    f1 = jax.nn.relu(layernorm_ref(mm(x, p["Wfc"]), p["gamma"], p["beta"]))
    x2 = jax.nn.relu(mm(adj_hat, mm(jnp.concatenate([x1, f1], axis=-1), p["W2"])))
    x3 = jax.nn.relu(mm(adj_hat, mm(x2, p["W3"])))
    ones = jnp.ones((1, x3.shape[1]), jnp.float32)
    return mm(ones, x3)[:, 0, :]                  # dgl.sum_nodes readout


if __name__ == "__main__":
    # in_dim=16, hidden_dim=32, out_dim=32; 16 graphs of 16 nodes, 8 per step.
    B, N, IN_DIM, HID, OUT_DIM = 16, 16, 16, 32, 32
    H4 = 4 * HID

    key = jax.random.PRNGKey(0)
    ks = jax.random.split(key, 10)

    def w(k, shape, scale=0.1):
        return (scale * jax.random.normal(k, shape)).astype(jnp.float32)

    params = {
        "W1":    w(ks[0], (IN_DIM, H4)),                       # GraphConv layer1
        "Wfc":   w(ks[1], (IN_DIM, H4)),                       # fc1 Linear
        "gamma": (1.0 + 0.1 * jax.random.normal(ks[2], (H4,))).astype(jnp.float32),
        "beta":  (0.1 * jax.random.normal(ks[3], (H4,))).astype(jnp.float32),
        "W2":    w(ks[4], (2 * H4, H4)),                       # GraphConv layer2
        "W3":    w(ks[5], (H4, OUT_DIM)),                      # GraphConv layer3
    }

    adj_bin = (jax.random.uniform(ks[6], (B, N, N)) < 0.3).astype(jnp.float32)
    edge_w = jax.random.uniform(ks[7], (B, N, N), minval=0.1, maxval=1.0)
    adj_hat = normalize_adj(adj_bin, edge_w)
    x = jax.random.normal(ks[8], (B, N, IN_DIM), dtype=jnp.float32)

    readout = jax.block_until_ready(gcn_forward(adj_hat, x, params, block_b=8))
    assert readout.shape == (B, OUT_DIM), readout.shape

    # Tight check vs. a reference that mirrors the kernel's bf16 operand casts.
    ref_bf16 = gcn_ref(adj_hat, x, params, compute_dtype=jnp.bfloat16)
    err_b = float(jnp.max(jnp.abs(readout - ref_bf16)))
    assert jnp.allclose(readout, ref_bf16, atol=1e-3, rtol=1e-3), err_b

    # Loose check vs. the full-f32 module semantics (bounds bf16 quantization).
    ref_f32 = gcn_ref(adj_hat, x, params, compute_dtype=jnp.float32)
    err_f = float(jnp.max(jnp.abs(readout - ref_f32)))
    assert jnp.allclose(readout, ref_f32, atol=3e-2, rtol=3e-2), err_f

    print("KERNEL_OK")
</pallas_src>

<mosaic_0001>
module attributes {stable_mosaic.version = 11 : i64} {
  func.func @gcn_kernel(%arg0: i32, %arg1: memref<8x16x16xbf16, #tpu.memory_space<vmem>>, %arg2: memref<128x16xbf16, #tpu.memory_space<vmem>>, %arg3: memref<16x256xbf16, #tpu.memory_space<vmem>>, %arg4: memref<2x128xf32, #tpu.memory_space<vmem>>, %arg5: memref<256x128xbf16, #tpu.memory_space<vmem>>, %arg6: memref<128x32xbf16, #tpu.memory_space<vmem>>, %arg7: memref<8x32xf32, #tpu.memory_space<vmem>>) attributes {dimension_semantics = [#tpu.dimension_semantics<parallel>], iteration_bounds = array<i64: 2>, scalar_prefetch = 0 : i64, scratch_operands = 0 : i64, tpu.core_type = #tpu.core_type<tc>, window_params = [{transform_indices = @transform_0, window_bounds = array<i64: 8, 16, 16>}, {transform_indices = @transform_1, window_bounds = array<i64: 128, 16>}, {pipeline_mode = #tpu.pipeline_mode<synchronous>, transform_indices = @transform_2, window_bounds = array<i64: 16, 256>}, {pipeline_mode = #tpu.pipeline_mode<synchronous>, transform_indices = @transform_3, window_bounds = array<i64: 2, 128>}, {pipeline_mode = #tpu.pipeline_mode<synchronous>, transform_indices = @transform_4, window_bounds = array<i64: 256, 128>}, {pipeline_mode = #tpu.pipeline_mode<synchronous>, transform_indices = @transform_5, window_bounds = array<i64: 128, 32>}, {transform_indices = @transform_6, window_bounds = array<i64: 8, 32>}]} {
    %c0 = arith.constant 0 : index
    %c0_0 = arith.constant 0 : index
    %c0_1 = arith.constant 0 : index
    %0 = vector.load %arg1[%c0, %c0_0, %c0_1] : memref<8x16x16xbf16, #tpu.memory_space<vmem>>, vector<8x16x16xbf16>
    %c0_2 = arith.constant 0 : index
    %c0_3 = arith.constant 0 : index
    %1 = vector.load %arg2[%c0_2, %c0_3] : memref<128x16xbf16, #tpu.memory_space<vmem>>, vector<128x16xbf16>
    %c0_4 = arith.constant 0 : index
    %c0_5 = arith.constant 0 : index
    %2 = vector.load %arg3[%c0_4, %c0_5] : memref<16x256xbf16, #tpu.memory_space<vmem>>, vector<16x256xbf16>
    %cst = arith.constant dense<0.000000e+00> : vector<128x256xf32>
    %3 = tpu.matmul %1, %2, %cst {dimension_numbers = #tpu.dot_dimension_numbers<[1], [0], [0], [1], [0, 0, 1, 1], [], []>} : vector<128x16xbf16>, vector<16x256xbf16>, vector<128x256xf32> -> vector<128x256xf32>
    %4 = vector.extract_strided_slice %3 {offsets = [0, 0], sizes = [128, 128], strides = [1, 1]} : vector<128x256xf32> to vector<128x128xf32>
    %5 = vector.shape_cast %4 : vector<128x128xf32> to vector<8x16x128xf32>
    %6 = arith.truncf %5 : vector<8x16x128xf32> to vector<8x16x128xbf16>
    "tpu.trace_start"() <{level = 10 : i32, message = "gij,gjf->gif"}> : () -> ()
    %cst_6 = arith.constant dense<0.000000e+00> : vector<8x16x128xf32>
    %7 = tpu.matmul %0, %6, %cst_6 {dimension_numbers = #tpu.dot_dimension_numbers<[2], [1], [1], [2], [0, 0, 0, 1, 1, 2], [0], [0]>} : vector<8x16x16xbf16>, vector<8x16x128xbf16>, vector<8x16x128xf32> -> vector<8x16x128xf32>
    "tpu.trace_stop"() : () -> ()
    %cst_7 = arith.constant 0.000000e+00 : f32
    %8 = vector.broadcast %cst_7 : f32 to vector<8x16x128xf32>
    %9 = arith.maximumf %7, %8 : vector<8x16x128xf32>
    %10 = vector.shape_cast %9 : vector<8x16x128xf32> to vector<128x128xf32>
    %11 = vector.extract_strided_slice %3 {offsets = [0, 128], sizes = [128, 128], strides = [1, 1]} : vector<128x256xf32> to vector<128x128xf32>
    %c0_8 = arith.constant 0 : index
    %c0_9 = arith.constant 0 : index
    %12 = vector.load %arg4[%c0_8, %c0_9] : memref<2x128xf32, #tpu.memory_space<vmem>>, vector<1x128xf32>
    %c1 = arith.constant 1 : index
    %c0_10 = arith.constant 0 : index
    %13 = vector.load %arg4[%c1, %c0_10] : memref<2x128xf32, #tpu.memory_space<vmem>>, vector<1x128xf32>
    %cst_11 = arith.constant dense<0.000000e+00> : vector<128xf32>
    %14 = vector.multi_reduction <add>, %11, %cst_11 [1] : vector<128x128xf32> to vector<128xf32>
    %15 = vector.shape_cast %14 : vector<128xf32> to vector<128x1xf32>
    %cst_12 = arith.constant 1.280000e+02 : f32
    %16 = vector.broadcast %cst_12 : f32 to vector<128x1xf32>
    %17 = arith.divf %15, %16 : vector<128x1xf32>
    %18 = arith.mulf %11, %11 : vector<128x128xf32>
    %cst_13 = arith.constant dense<0.000000e+00> : vector<128xf32>
    %19 = vector.multi_reduction <add>, %18, %cst_13 [1] : vector<128x128xf32> to vector<128xf32>
    %20 = vector.shape_cast %19 : vector<128xf32> to vector<128x1xf32>
    %cst_14 = arith.constant 1.280000e+02 : f32
    %21 = vector.broadcast %cst_14 : f32 to vector<128x1xf32>
    %22 = arith.divf %20, %21 : vector<128x1xf32>
    %23 = arith.mulf %17, %17 : vector<128x1xf32>
    %24 = arith.subf %22, %23 : vector<128x1xf32>
    %cst_15 = arith.constant 0.000000e+00 : f32
    %25 = vector.broadcast %cst_15 : f32 to vector<128x1xf32>
    %26 = arith.maximumf %24, %25 : vector<128x1xf32>
    %27 = vector.broadcast %17 : vector<128x1xf32> to vector<128x128xf32>
    %28 = arith.subf %11, %27 : vector<128x128xf32>
    %cst_16 = arith.constant 9.99999974E-6 : f32
    %29 = vector.broadcast %cst_16 : f32 to vector<128x1xf32>
    %30 = arith.addf %26, %29 : vector<128x1xf32>
    %31 = math.rsqrt %30 : vector<128x1xf32>
    %32 = vector.broadcast %31 : vector<128x1xf32> to vector<128x128xf32>
    %33 = arith.mulf %28, %32 : vector<128x128xf32>
    %34 = vector.broadcast %12 : vector<1x128xf32> to vector<128x128xf32>
    %35 = arith.mulf %33, %34 : vector<128x128xf32>
    %36 = vector.broadcast %13 : vector<1x128xf32> to vector<128x128xf32>
    %37 = arith.addf %35, %36 : vector<128x128xf32>
    %cst_17 = arith.constant 0.000000e+00 : f32
    %38 = vector.broadcast %cst_17 : f32 to vector<128x128xf32>
    %39 = arith.maximumf %37, %38 : vector<128x128xf32>
    %c0_18 = arith.constant 0 : index
    %c0_19 = arith.constant 0 : index
    %40 = vector.load %arg5[%c0_18, %c0_19] : memref<256x128xbf16, #tpu.memory_space<vmem>>, vector<128x128xbf16>
    %41 = arith.truncf %10 : vector<128x128xf32> to vector<128x128xbf16>
    %cst_20 = arith.constant dense<0.000000e+00> : vector<128x128xf32>
    %42 = tpu.matmul %41, %40, %cst_20 {dimension_numbers = #tpu.dot_dimension_numbers<[1], [0], [0], [1], [0, 0, 1, 1], [], []>} : vector<128x128xbf16>, vector<128x128xbf16>, vector<128x128xf32> -> vector<128x128xf32>
    %c128 = arith.constant 128 : index
    %c0_21 = arith.constant 0 : index
    %43 = vector.load %arg5[%c128, %c0_21] : memref<256x128xbf16, #tpu.memory_space<vmem>>, vector<128x128xbf16>
    %44 = arith.truncf %39 : vector<128x128xf32> to vector<128x128xbf16>
    %cst_22 = arith.constant dense<0.000000e+00> : vector<128x128xf32>
    %45 = tpu.matmul %44, %43, %cst_22 {dimension_numbers = #tpu.dot_dimension_numbers<[1], [0], [0], [1], [0, 0, 1, 1], [], []>} : vector<128x128xbf16>, vector<128x128xbf16>, vector<128x128xf32> -> vector<128x128xf32>
    %46 = arith.addf %42, %45 : vector<128x128xf32>
    %47 = vector.shape_cast %46 : vector<128x128xf32> to vector<8x16x128xf32>
    %48 = arith.truncf %47 : vector<8x16x128xf32> to vector<8x16x128xbf16>
    "tpu.trace_start"() <{level = 10 : i32, message = "gij,gjf->gif"}> : () -> ()
    %cst_23 = arith.constant dense<0.000000e+00> : vector<8x16x128xf32>
    %49 = tpu.matmul %0, %48, %cst_23 {dimension_numbers = #tpu.dot_dimension_numbers<[2], [1], [1], [2], [0, 0, 0, 1, 1, 2], [0], [0]>} : vector<8x16x16xbf16>, vector<8x16x128xbf16>, vector<8x16x128xf32> -> vector<8x16x128xf32>
    "tpu.trace_stop"() : () -> ()
    %cst_24 = arith.constant 0.000000e+00 : f32
    %50 = vector.broadcast %cst_24 : f32 to vector<8x16x128xf32>
    %51 = arith.maximumf %49, %50 : vector<8x16x128xf32>
    %52 = vector.shape_cast %51 : vector<8x16x128xf32> to vector<128x128xf32>
    %c0_25 = arith.constant 0 : index
    %c0_26 = arith.constant 0 : index
    %53 = vector.load %arg6[%c0_25, %c0_26] : memref<128x32xbf16, #tpu.memory_space<vmem>>, vector<128x32xbf16>
    %54 = arith.truncf %52 : vector<128x128xf32> to vector<128x128xbf16>
    %cst_27 = arith.constant dense<0.000000e+00> : vector<128x32xf32>
    %55 = tpu.matmul %54, %53, %cst_27 {dimension_numbers = #tpu.dot_dimension_numbers<[1], [0], [0], [1], [0, 0, 1, 1], [], []>} : vector<128x128xbf16>, vector<128x32xbf16>, vector<128x32xf32> -> vector<128x32xf32>
    %56 = vector.shape_cast %55 : vector<128x32xf32> to vector<8x16x32xf32>
    %57 = arith.truncf %56 : vector<8x16x32xf32> to vector<8x16x32xbf16>
    "tpu.trace_start"() <{level = 10 : i32, message = "gij,gjf->gif"}> : () -> ()
    %cst_28 = arith.constant dense<0.000000e+00> : vector<8x16x32xf32>
    %58 = tpu.matmul %0, %57, %cst_28 {dimension_numbers = #tpu.dot_dimension_numbers<[2], [1], [1], [2], [0, 0, 0, 1, 1, 2], [0], [0]>} : vector<8x16x16xbf16>, vector<8x16x32xbf16>, vector<8x16x32xf32> -> vector<8x16x32xf32>
    "tpu.trace_stop"() : () -> ()
    %cst_29 = arith.constant 0.000000e+00 : f32
    %59 = vector.broadcast %cst_29 : f32 to vector<8x16x32xf32>
    %60 = arith.maximumf %58, %59 : vector<8x16x32xf32>
    %61 = vector.shape_cast %60 : vector<8x16x32xf32> to vector<128x32xf32>
    %62 = tpu.iota {dimensions = array<i32: 0>} : vector<8x128xi32>
    %63 = tpu.iota {dimensions = array<i32: 1>} : vector<8x128xi32>
    %c16_i32 = arith.constant 16 : i32
    %64 = vector.broadcast %c16_i32 : i32 to vector<8x128xi32>
    %65 = arith.muli %62, %64 : vector<8x128xi32>
    %66 = arith.cmpi sge, %63, %65 : vector<8x128xi32>
    %c1_i32 = arith.constant 1 : i32
    %67 = vector.broadcast %c1_i32 : i32 to vector<8x128xi32>
    %68 = arith.addi %62, %67 : vector<8x128xi32>
    %c16_i32_30 = arith.constant 16 : i32
    %69 = vector.broadcast %c16_i32_30 : i32 to vector<8x128xi32>
    %70 = arith.muli %68, %69 : vector<8x128xi32>
    %71 = arith.cmpi slt, %63, %70 : vector<8x128xi32>
    %72 = arith.andi %66, %71 : vector<8x128xi1>
    %73 = arith.extui %72 : vector<8x128xi1> to vector<8x128xi32>
    %74 = arith.sitofp %73 : vector<8x128xi32> to vector<8x128xf32>
    %75 = arith.truncf %74 : vector<8x128xf32> to vector<8x128xbf16>
    %76 = arith.truncf %61 : vector<128x32xf32> to vector<128x32xbf16>
    %cst_31 = arith.constant dense<0.000000e+00> : vector<8x32xf32>
    %77 = tpu.matmul %75, %76, %cst_31 {dimension_numbers = #tpu.dot_dimension_numbers<[1], [0], [0], [1], [0, 0, 1, 1], [], []>} : vector<8x128xbf16>, vector<128x32xbf16>, vector<8x32xf32> -> vector<8x32xf32>
    %c0_32 = arith.constant 0 : index
    %c0_33 = arith.constant 0 : index
    %78 = vector.load %arg7[%c0_32, %c0_33] : memref<8x32xf32, #tpu.memory_space<vmem>>, vector<8x32xf32>
    tpu.vector_store %arg7[%c0_32, %c0_33], %77 {strides = array<i32>} : memref<8x32xf32, #tpu.memory_space<vmem>>, vector<8x32xf32>,
    return
  }
  func.func @transform_0(%arg0: i32) -> (i32, i32, i32) {
    %c0_i32 = arith.constant 0 : i32
    %c0_i32_0 = arith.constant 0 : i32
    %c0_i32_1 = arith.constant 0 : i32
    return %arg0, %c0_i32, %c0_i32_0 : i32, i32, i32
  }
  func.func @transform_1(%arg0: i32) -> (i32, i32) {
    %c0_i32 = arith.constant 0 : i32
    %c0_i32_0 = arith.constant 0 : i32
    return %arg0, %c0_i32 : i32, i32
  }
  func.func @transform_2(%arg0: i32) -> (i32, i32) {
    %c0_i32 = arith.constant 0 : i32
    %c0_i32_0 = arith.constant 0 : i32
    %c0_i32_1 = arith.constant 0 : i32
    return %c0_i32, %c0_i32_0 : i32, i32
  }
  func.func @transform_3(%arg0: i32) -> (i32, i32) {
    %c0_i32 = arith.constant 0 : i32
    %c0_i32_0 = arith.constant 0 : i32
    %c0_i32_1 = arith.constant 0 : i32
    return %c0_i32, %c0_i32_0 : i32, i32
  }
  func.func @transform_4(%arg0: i32) -> (i32, i32) {
    %c0_i32 = arith.constant 0 : i32
    %c0_i32_0 = arith.constant 0 : i32
    %c0_i32_1 = arith.constant 0 : i32
    return %c0_i32, %c0_i32_0 : i32, i32
  }
  func.func @transform_5(%arg0: i32) -> (i32, i32) {
    %c0_i32 = arith.constant 0 : i32
    %c0_i32_0 = arith.constant 0 : i32
    %c0_i32_1 = arith.constant 0 : i32
    return %c0_i32, %c0_i32_0 : i32, i32
  }
  func.func @transform_6(%arg0: i32) -> (i32, i32) {
    %c0_i32 = arith.constant 0 : i32
    %c0_i32_0 = arith.constant 0 : i32
    return %arg0, %c0_i32 : i32, i32
  }
}

</mosaic_0001>

<llo_original>
// kernel: tpu_custom_call.1
$region0: #{tpu_custom_call.1}
  #allocation0 [shape = 'u32[]', space=smem, size = 0x4, offset = 0x4, fixed_abs, tag = 'smem constant byte address 0x4 - core index']
  #allocation1 [shape = 'u32[144,128]{1,0:T(1,128)}', space=vmem, size = 0x12000, scoped, tag = 'internal scratch']
  %s0 = inlined_call_operand.vmem [shape: bf16[16,16,16], index: 0, kind: input, shape index: {}]
  %s1 = inlined_call_operand.vmem [shape: bf16[256,16], index: 1, kind: input, shape index: {}]
  %s2 = inlined_call_operand.vmem [shape: bf16[16,256], index: 2, kind: input, shape index: {}]
  %s3 = inlined_call_operand.vmem [shape: f32[2,128], index: 3, kind: input, shape index: {}]
  %s4 = inlined_call_operand.hbm [shape: bf16[256,128], index: 4, kind: input, shape index: {}]
  %s5 = inlined_call_operand.vmem [shape: bf16[128,32], index: 5, kind: input, shape index: {}]
  %s6 = inlined_call_operand.hbm [shape: f32[16,32], index: 6, kind: output, shape index: {}]
  %s7 = sld [smem:[#allocation0]]
  $region61: #{tpu_custom_call.1} parent=0
    _
  %s9 = ssub.s32 1, %s7
  %s10 = scalar_select 0, %s9, %s7
  $region1: #{tpu_custom_call.1} parent=0
    #allocation2 [shape = 'u8[65536]{0}', space=vmem, size = 0x10000, scoped, tag = 'input window, operand 4, single buffered']
    #allocation3 [shape = 's32[2]{0}', space=sflag, size = 0x8, scoped, tag = 'scoped memory for tpu_custom_call.1']
    #allocation4 [shape = 's32[2]{0}', space=sflag, size = 0x8, scoped, tag = 'scoped memory for tpu_custom_call.1']
    #allocation5 [shape = 'u8[8192]{0}', space=vmem, size = 0x2000, scoped, tag = 'output window, operand 0']
    %11 = vsyncpa [#allocation3], 0
    %12 = vsyncpa [#allocation4], 0
    %s13 = scalar_lea.sflag [#allocation4], 1
    %14 = vsyncpa %s13, 0
    loop: start=0, step=1, limit=4
    $region2: #{tpu_custom_call.1} parent=1 // loop_pre_header
      _
    $region3: #{tpu_custom_call.1} parent=1 // loop_header
      %s16 = sphi 0, %s20
      %p17 = scmp.ge.s32.totalorder %s16, 4
      %s26 = sphi 0, %s28
      %s29 = sphi 0, %s26
      %s30 = sphi 0, %s29
      %s46 = sphi 0, %s30
      %s52 = sphi 0, %s54
      %s55 = sphi 0, %s52
      %s56 = sphi 0, %s55
      %s72 = sphi 0, %s56
      %s76 = sphi 0, %s76
      %s78 = sphi 0, %s76
      %s79 = sphi 0, %s78
      %s93 = sphi 0, %s79
      %s97 = sphi 0, %s97
      %s99 = sphi 0, %s97
      %s100 = sphi 0, %s99
      %s114 = sphi 0, %s100
      %s118 = sphi 0, %s118
      %s120 = sphi 0, %s118
      %s121 = sphi 0, %s120
      %s135 = sphi 0, %s121
      %s139 = sphi 0, %s139
      %s141 = sphi 0, %s139
      %s142 = sphi 0, %s141
      %s156 = sphi 0, %s142
      %s162 = sphi 0, %s164
      %s165 = sphi 0, %s162
      %s166 = sphi 0, %s165
      %s182 = sphi 0, %s166
    $region4: #{tpu_custom_call.1} parent=1 // loop_header_branch
      %19 = sbr.rel (%p17) target = $region8
    $region5: #{tpu_custom_call.1} parent=1 // loop_body
      %s21 = ssub.s32 %s16, 1
      %s22 = ssub.s32 %s16, 2
      %s23 = sadd.s32 %s16, 1
      %s24 = ssub.s32 %s16, %s23
      %p25 = scmp.eq.s32.totalorder %s24, 0
      %s27 = sadd.s32 %s26, 1
      %s28 = scalar_select %p25, %s26, %s27
      %p31 = pneg %p25
      %p32 = scmp.eq.s32.totalorder %s16, 1
      %p33 = por %p31, %p32
      %p34 = scmp.ne.s32.totalorder %s26, %s29
      %p35 = scmp.eq.s32.totalorder %s16, 0
      %p36 = por %p34, %p35
      %p37 = scmp.ne.s32.totalorder %s26, %s29
      %p38 = scmp.eq.s32.totalorder %s21, 1
      %p39 = por %p37, %p38
      %p40 = scmp.ne.s32.totalorder %s29, %s30
      %p41 = scmp.eq.s32.totalorder %s21, 0
      %p42 = por %p40, %p41
      %p43 = scmp.ne.s32.totalorder %s29, %s30
      %p44 = scmp.eq.s32.totalorder %s22, 1
      %p45 = por %p43, %p44
      %p47 = scmp.ne.s32.totalorder %s30, %s46
      %p48 = scmp.eq.s32.totalorder %s22, 0
      %p49 = por %p47, %p48
      %s50 = ssub.s32 %s16, %s23
      %p51 = scmp.eq.s32.totalorder %s50, 0
      %s53 = sadd.s32 %s52, 1
      %s54 = scalar_select %p51, %s52, %s53
      %p57 = pneg %p51
      %p58 = scmp.eq.s32.totalorder %s16, 1
      %p59 = por %p57, %p58
      %p60 = scmp.ne.s32.totalorder %s52, %s55
      %p61 = scmp.eq.s32.totalorder %s16, 0
      %p62 = por %p60, %p61
      %p63 = scmp.ne.s32.totalorder %s52, %s55
      %p64 = scmp.eq.s32.totalorder %s21, 1
      %p65 = por %p63, %p64
      %p66 = scmp.ne.s32.totalorder %s55, %s56
      %p67 = scmp.eq.s32.totalorder %s21, 0
      %p68 = por %p66, %p67
      %p69 = scmp.ne.s32.totalorder %s55, %s56
      %p70 = scmp.eq.s32.totalorder %s22, 1
      %p71 = por %p69, %p70
      %p73 = scmp.ne.s32.totalorder %s56, %s72
      %p74 = scmp.eq.s32.totalorder %s22, 0
      %p75 = por %p73, %p74
      %s77 = sadd.s32 %s76, 1
      %p80 = scmp.eq.s32.totalorder %s16, 1
      %p81 = scmp.ne.s32.totalorder %s76, %s78
      %p82 = scmp.eq.s32.totalorder %s16, 0
      %p83 = por %p81, %p82
      %p84 = scmp.ne.s32.totalorder %s76, %s78
      %p85 = scmp.eq.s32.totalorder %s21, 1
      %p86 = por %p84, %p85
      %p87 = scmp.ne.s32.totalorder %s78, %s79
      %p88 = scmp.eq.s32.totalorder %s21, 0
      %p89 = por %p87, %p88
      %p90 = scmp.ne.s32.totalorder %s78, %s79
      %p91 = scmp.eq.s32.totalorder %s22, 1
      %p92 = por %p90, %p91
      %p94 = scmp.ne.s32.totalorder %s79, %s93
      %p95 = scmp.eq.s32.totalorder %s22, 0
      %p96 = por %p94, %p95
      %s98 = sadd.s32 %s97, 1
      %p101 = scmp.eq.s32.totalorder %s16, 1
      %p102 = scmp.ne.s32.totalorder %s97, %s99
      %p103 = scmp.eq.s32.totalorder %s16, 0
      %p104 = por %p102, %p103
      %p105 = scmp.ne.s32.totalorder %s97, %s99
      %p106 = scmp.eq.s32.totalorder %s21, 1
      %p107 = por %p105, %p106
      %p108 = scmp.ne.s32.totalorder %s99, %s100
      %p109 = scmp.eq.s32.totalorder %s21, 0
      %p110 = por %p108, %p109
      %p111 = scmp.ne.s32.totalorder %s99, %s100
      %p112 = scmp.eq.s32.totalorder %s22, 1
      %p113 = por %p111, %p112
      %p115 = scmp.ne.s32.totalorder %s100, %s114
      %p116 = scmp.eq.s32.totalorder %s22, 0
      %p117 = por %p115, %p116
      %s119 = sadd.s32 %s118, 1
      %p122 = scmp.eq.s32.totalorder %s16, 1
      %p123 = scmp.ne.s32.totalorder %s118, %s120
      %p124 = scmp.eq.s32.totalorder %s16, 0
      %p125 = por %p123, %p124
      %p126 = scmp.ne.s32.totalorder %s118, %s120
      %p127 = scmp.eq.s32.totalorder %s21, 1
      %p128 = por %p126, %p127
      %p129 = scmp.ne.s32.totalorder %s120, %s121
      %p130 = scmp.eq.s32.totalorder %s21, 0
      %p131 = por %p129, %p130
      %p132 = scmp.ne.s32.totalorder %s120, %s121
      %p133 = scmp.eq.s32.totalorder %s22, 1
      %p134 = por %p132, %p133
      %p136 = scmp.ne.s32.totalorder %s121, %s135
      %p137 = scmp.eq.s32.totalorder %s22, 0
      %p138 = por %p136, %p137
      %s140 = sadd.s32 %s139, 1
      %p143 = scmp.eq.s32.totalorder %s16, 1
      %p144 = scmp.ne.s32.totalorder %s139, %s141
      %p145 = scmp.eq.s32.totalorder %s16, 0
      %p146 = por %p144, %p145
      %p147 = scmp.ne.s32.totalorder %s139, %s141
      %p148 = scmp.eq.s32.totalorder %s21, 1
      %p149 = por %p147, %p148
      %p150 = scmp.ne.s32.totalorder %s141, %s142
      %p151 = scmp.eq.s32.totalorder %s21, 0
      %p152 = por %p150, %p151
      %p153 = scmp.ne.s32.totalorder %s141, %s142
      %p154 = scmp.eq.s32.totalorder %s22, 1
      %p155 = por %p153, %p154
      %p157 = scmp.ne.s32.totalorder %s142, %s156
      %p158 = scmp.eq.s32.totalorder %s22, 0
      %p159 = por %p157, %p158
      %s160 = ssub.s32 %s16, %s23
      %p161 = scmp.eq.s32.totalorder %s160, 0
      %s163 = sadd.s32 %s162, 1
      %s164 = scalar_select %p161, %s162, %s163
      %p167 = pneg %p161
      %p168 = scmp.eq.s32.totalorder %s16, 1
      %p169 = por %p167, %p168
      %p170 = scmp.ne.s32.totalorder %s162, %s165
      %p171 = scmp.eq.s32.totalorder %s16, 0
      %p172 = por %p170, %p171
      %p173 = scmp.ne.s32.totalorder %s162, %s165
      %p174 = scmp.eq.s32.totalorder %s21, 1
      %p175 = por %p173, %p174
      %p176 = scmp.ne.s32.totalorder %s165, %s166
      %p177 = scmp.eq.s32.totalorder %s21, 0
      %p178 = por %p176, %p177
      %p179 = scmp.ne.s32.totalorder %s165, %s166
      %p180 = scmp.eq.s32.totalorder %s22, 1
      %p181 = por %p179, %p180
      %p183 = scmp.ne.s32.totalorder %s166, %s182
      %p184 = scmp.eq.s32.totalorder %s22, 0
      %p185 = por %p183, %p184
      %p186 = scmp.le.s32.totalorder 1, %s16
      %p187 = scmp.lt.s32.totalorder %s16, 3
      %p188 = pnand %p186, %p187
      %p189 = pneg %p188
      // Predicated region
      $region9: #{tpu_custom_call.1} parent=5 // pred_check
        _
      $region10: #{tpu_custom_call.1} parent=5 // pred_check_branch
        %191 = sbr.rel (%p188) target = $region12
      $region11: #{tpu_custom_call.1} parent=5 // pred_region
        %s192 = ssub.s32 %s16, 1
        // Predicated region
        $region13: #{tpu_custom_call.1} parent=11 // pred_check
          %p193 = pneg %p89
        $region14: #{tpu_custom_call.1} parent=11 // pred_check_branch
          %195 = sbr.rel (%p193) target = $region16
        $region15: #{tpu_custom_call.1} parent=11 // pred_region
          _
        $region16: #{tpu_custom_call.1} parent=11 // pred_fallthru
          _
        // Predicated region
        $region17: #{tpu_custom_call.1} parent=11 // pred_check
          %p196 = pneg %p110
        $region18: #{tpu_custom_call.1} parent=11 // pred_check_branch
          %198 = sbr.rel (%p196) target = $region20
        $region19: #{tpu_custom_call.1} parent=11 // pred_region
          _
        $region20: #{tpu_custom_call.1} parent=11 // pred_fallthru
          _
        // Predicated region
        $region21: #{tpu_custom_call.1} parent=11 // pred_check
          %p199 = pneg %p131
        $region22: #{tpu_custom_call.1} parent=11 // pred_check_branch
          %201 = sbr.rel (%p199) target = $region24
        $region23: #{tpu_custom_call.1} parent=11 // pred_region
          %s203 = ssub.s32 2048, 2048
          %204 = vsyncadd [#allocation3], %s203
          %s205 = sshll.u32 [#allocation2], 4
          %s206 = int_to_ptr.vmem [resolvable:$true] %s205
          %211 = dma.hbm_to_vmem [thread:$0]  %s4, 2048, %s206, [#allocation3], 64, 64, 4
        $region24: #{tpu_custom_call.1} parent=11 // pred_fallthru
          _
        // Predicated region
        $region25: #{tpu_custom_call.1} parent=11 // pred_check
          %p212 = pneg %p152
        $region26: #{tpu_custom_call.1} parent=11 // pred_check_branch
          %214 = sbr.rel (%p212) target = $region28
        $region27: #{tpu_custom_call.1} parent=11 // pred_region
          _
        $region28: #{tpu_custom_call.1} parent=11 // pred_fallthru
          _
      $region12: #{tpu_custom_call.1} parent=5 // pred_fallthru
        _
      %p215 = scmp.lt.s32.totalorder %s16, 2
      // Predicated region
      $region29: #{tpu_custom_call.1} parent=5 // pred_check
        %p216 = pneg %p215
      $region30: #{tpu_custom_call.1} parent=5 // pred_check_branch
        %218 = sbr.rel (%p216) target = $region32
      $region31: #{tpu_custom_call.1} parent=5 // pred_region
        // Predicated region
        $region33: #{tpu_custom_call.1} parent=31 // pred_check
          %p219 = pneg %p36
        $region34: #{tpu_custom_call.1} parent=31 // pred_check_branch
          %221 = sbr.rel (%p219) target = $region36
        $region35: #{tpu_custom_call.1} parent=31 // pred_region
          %s222 = smul.u32 8, %s16
          %p223 = scmp.lt.s32.totalorder %s222, 15
          %s224 = scalar_select %p223, %s222, 15
          %s225 = smul.addr %s224, 2
          %s226 = smul.addr %s225, 4
          %s227 = scalar_lea.vmem %s0, %s226
          %s228 = smul.u32 8, %s16
        $region36: #{tpu_custom_call.1} parent=31 // pred_fallthru
          _
        // Predicated region
        $region37: #{tpu_custom_call.1} parent=31 // pred_check
          %p229 = pneg %p62
        $region38: #{tpu_custom_call.1} parent=31 // pred_check_branch
          %231 = sbr.rel (%p229) target = $region40
        $region39: #{tpu_custom_call.1} parent=31 // pred_region
          %s232 = smul.u32 16, %s16
          %p233 = scmp.lt.s32.totalorder %s232, 31
          %s234 = scalar_select %p233, %s232, 31
          %s235 = smul.addr %s234, 4
          %s236 = scalar_lea.vmem %s1, %s235
          %s237 = smul.u32 16, %s16
        $region40: #{tpu_custom_call.1} parent=31 // pred_fallthru
          _
      $region32: #{tpu_custom_call.1} parent=5 // pred_fallthru
        _
      %p238 = scmp.le.s32.totalorder 1, %s16
      %p239 = scmp.lt.s32.totalorder %s16, 3
      %p240 = pnand %p238, %p239
      %p241 = pneg %p240
      // Predicated region
      $region41: #{tpu_custom_call.1} parent=5 // pred_check
        _
      $region42: #{tpu_custom_call.1} parent=5 // pred_check_branch
        %243 = sbr.rel (%p240) target = $region44
      $region43: #{tpu_custom_call.1} parent=5 // pred_region
        %s244 = ssub.s32 %s16, 1
        // Predicated region
        $region45: #{tpu_custom_call.1} parent=43 // pred_check
          %p245 = pneg %p131
        $region46: #{tpu_custom_call.1} parent=43 // pred_check_branch
          %247 = sbr.rel (%p245) target = $region48
        $region47: #{tpu_custom_call.1} parent=43 // pred_region
          %248 = dma.done [#allocation3], 2048
        $region48: #{tpu_custom_call.1} parent=43 // pred_fallthru
          _
        %s249 = smul.u32 8, %s21
        %p250 = scmp.lt.s32.totalorder %s249, 15
        %s251 = scalar_select %p250, %s249, 15
        %s252 = smul.addr %s251, 2
        %s253 = smul.addr %s252, 4
        %s254 = scalar_lea.vmem %s0, %s253
        %p255 = pneg %p42
        %p256 = pneg %p39
        %s257 = smul.u32 16, %s21
        %p258 = scmp.lt.s32.totalorder %s257, 31
        %s259 = scalar_select %p258, %s257, 31
        %s260 = smul.addr %s259, 4
        %s261 = scalar_lea.vmem %s1, %s260
        %p262 = pneg %p68
        %p263 = pneg %p65
        %p264 = pneg %p89
        %p265 = pneg %p86
        %p266 = pneg %p110
        %p267 = pneg %p107
        %p268 = pneg %p131
        %p269 = pneg %p128
        %p270 = pneg %p152
        %p271 = pneg %p149
        %p272 = pneg %p178
        %p273 = pneg %p175
        %s274 = sand.u32 %s165, 1
        %s275 = scalar_lea.sflag [#allocation4], %s274
        %s276 = sand.u32 %s165, 1
        %s277 = smul.addr %s276, 8
        %s278 = scalar_lea.vmem [#allocation5], %s277
        %s279 = smul.u32 8, %s21
        %p280 = scmp.lt.s32.totalorder %s279, 15
        %s281 = scalar_select %p280, %s279, 15
        %s282 = smul.addr %s281, 2
        %s283 = smul.addr %s282, 4
        %s284 = scalar_lea.vmem %s0, %s283
        %s285 = smul.u32 8, %s21
        %s286 = smul.u32 16, %s21
        %p287 = scmp.lt.s32.totalorder %s286, 31
        %s288 = scalar_select %p287, %s286, 31
        %s289 = smul.addr %s288, 4
        %s290 = scalar_lea.vmem %s1, %s289
        %s291 = smul.u32 16, %s21
        %v293 = vld [vmem:[%s284] sm:$0xf]
        %v294 = vld [vmem:[%s284 + $0x4] sm:$0xf]
        %v295 = vld [vmem:[%s284 + $0x8] sm:$0xf]
        %v296 = vld [vmem:[%s284 + $0xc] sm:$0xf]
        %v297 = vld [vmem:[%s284 + $0x10] sm:$0xf]
        %v298 = vld [vmem:[%s284 + $0x14] sm:$0xf]
        %v299 = vld [vmem:[%s284 + $0x18] sm:$0xf]
        %v300 = vld [vmem:[%s284 + $0x1c] sm:$0xf]
        %v301 = vld [vmem:[%s284 + $0x20] sm:$0xf]
        %v302 = vld [vmem:[%s284 + $0x24] sm:$0xf]
        %v303 = vld [vmem:[%s284 + $0x28] sm:$0xf]
        %v304 = vld [vmem:[%s284 + $0x2c] sm:$0xf]
        %v305 = vld [vmem:[%s284 + $0x30] sm:$0xf]
        %v306 = vld [vmem:[%s284 + $0x34] sm:$0xf]
        %v307 = vld [vmem:[%s284 + $0x38] sm:$0xf]
        %v308 = vld [vmem:[%s284 + $0x3c] sm:$0xf]
        %v309 = vld [vmem:[%s290] sm:$0xf]
        %v310 = vld [vmem:[%s290 + $0x4] sm:$0xf]
        %v311 = vld [vmem:[%s290 + $0x8] sm:$0xf]
        %v312 = vld [vmem:[%s290 + $0xc] sm:$0xf]
        %v313 = vld [vmem:[%s290 + $0x10] sm:$0xf]
        %v314 = vld [vmem:[%s290 + $0x14] sm:$0xf]
        %v315 = vld [vmem:[%s290 + $0x18] sm:$0xf]
        %v316 = vld [vmem:[%s290 + $0x1c] sm:$0xf]
        %v317 = vld [vmem:[%s290 + $0x20] sm:$0xf]
        %v318 = vld [vmem:[%s290 + $0x24] sm:$0xf]
        %v319 = vld [vmem:[%s290 + $0x28] sm:$0xf]
        %v320 = vld [vmem:[%s290 + $0x2c] sm:$0xf]
        %v321 = vld [vmem:[%s290 + $0x30] sm:$0xf]
        %v322 = vld [vmem:[%s290 + $0x34] sm:$0xf]
        %v323 = vld [vmem:[%s290 + $0x38] sm:$0xf]
        %v324 = vld [vmem:[%s290 + $0x3c] sm:$0xf]
        %v325 = vld [vmem:[%s2] sm:$0xff]
        %v326 = vld [vmem:[%s2 + $0x8] sm:$0xff]
        %v343 = vunpack.c.l.b16 %v309
        %v344 = vunpack.c.l.b16 %v310
        %v345 = vunpack.c.l.b16 %v311
        %v346 = vunpack.c.l.b16 %v312
        %v347 = vunpack.c.l.b16 %v313
        %v348 = vunpack.c.l.b16 %v314
        %v349 = vunpack.c.l.b16 %v315
        %v350 = vunpack.c.l.b16 %v316
        %v351 = vunpack.c.l.b16 %v317
        %v352 = vunpack.c.l.b16 %v318
        %v353 = vunpack.c.l.b16 %v319
        %v354 = vunpack.c.l.b16 %v320
        %v355 = vunpack.c.l.b16 %v321
        %v356 = vunpack.c.l.b16 %v322
        %v357 = vunpack.c.l.b16 %v323
        %v358 = vunpack.c.l.b16 %v324
        %v359 = vpack.c.b16 %v344, %v343
        %v360 = vpack.c.b16 %v346, %v345
        %v361 = vpack.c.b16 %v348, %v347
        %v362 = vpack.c.b16 %v350, %v349
        %v363 = vpack.c.b16 %v352, %v351
        %v364 = vpack.c.b16 %v354, %v353
        %v365 = vpack.c.b16 %v356, %v355
        %v366 = vpack.c.b16 %v358, %v357
        %v369 = vunpack.c.l.b16 %v325
        %v370 = vunpack.c.h.b16 %v325
        %v371 = vunpack.c.l.b16 %v326
        %v372 = vunpack.c.h.b16 %v326
        %v373 = vpack.c.b16 %v371, %v369
        %v374 = vpack.c.b16 %v372, %v370
        %vm377 = vcmask 130048
        %v379 = vsel %vm377, %v359, 0
        %v382 = vsel %vm377, %v360, 0
        %v385 = vsel %vm377, %v361, 0
        %v388 = vsel %vm377, %v362, 0
        %v391 = vsel %vm377, %v363, 0
        %v394 = vsel %vm377, %v364, 0
        %v397 = vsel %vm377, %v365, 0
        %v400 = vsel %vm377, %v366, 0
        %402 = vmatprep.subr.bf16.mxu0 %v374
        %403 = vmatpush1.bf16.msra.mxu0 %v373
        %404 = vmatprep.subr.bf16.mxu0 0
        %405 = vmatpush1.bf16.msra.mxu0 0
        %406 = vmatprep.subr.bf16.mxu0 0
        %407 = vmatpush1.bf16.msra.mxu0 0
        %408 = vmatprep.subr.bf16.mxu0 0
        %409 = vmatpush1.bf16.msra.mxu0 0
        %410 = vmatprep.subr.bf16.mxu0 0
        %411 = vmatpush1.bf16.msra.mxu0 0
        %412 = vmatprep.subr.bf16.mxu0 0
        %413 = vmatpush1.bf16.msra.mxu0 0
        %414 = vmatprep.subr.bf16.mxu0 0
        %415 = vmatpush1.bf16.msra.mxu0 0
        %416 = vmatprep.subr.bf16.mxu0 0
        %417 = vmatpush1.bf16.msra.mxu0 0
        %418 = vmatprep.subr.bf16.mxu0 0
        %419 = vmatpush1.bf16.msra.mxu0 0
        %420 = vmatprep.subr.bf16.mxu0 0
        %421 = vmatpush1.bf16.msra.mxu0 0
        %422 = vmatprep.subr.bf16.mxu0 0
        %423 = vmatpush1.bf16.msra.mxu0 0
        %424 = vmatprep.subr.bf16.mxu0 0
        %425 = vmatpush1.bf16.msra.mxu0 0
        %426 = vmatprep.subr.bf16.mxu0 0
        %427 = vmatpush1.bf16.msra.mxu0 0
        %428 = vmatprep.subr.bf16.mxu0 0
        %429 = vmatpush1.bf16.msra.mxu0 0
        %430 = vmatprep.subr.bf16.mxu0 0
        %431 = vmatpush1.bf16.msra.mxu0 0
        %432 = vmatprep.subr.bf16.mxu0 0
        %433 = vmatpush1.bf16.msra.mxu0 0
        %434 = vmatprep.mubr.bf16.mxu0 0
        %435 = vmatmul.mubr.bf16.gmra.mrb[0].mxu0 %v379
        %v436 = vpop.f32.mrb[0].mxu0
        %v437 = vadd.f32 0.0, %v436
        %v438 = vpop.f32.mrb[0].mxu0
        %v439 = vadd.f32 0.0, %v438
        %v440 = vpop.f32.mrb[0].mxu0
        %v441 = vadd.f32 0.0, %v440
        %v442 = vpop.f32.mrb[0].mxu0
        %v443 = vadd.f32 0.0, %v442
        %444 = vmatprep.mubr.bf16.mxu0 0
        %445 = vmatmul.mubr.bf16.gmra.mrb[0].mxu0 %v382
        %v446 = vpop.f32.mrb[0].mxu0
        %v447 = vadd.f32 0.0, %v446
        %v448 = vpop.f32.mrb[0].mxu0
        %v449 = vadd.f32 0.0, %v448
        %v450 = vpop.f32.mrb[0].mxu0
        %v451 = vadd.f32 0.0, %v450
        %v452 = vpop.f32.mrb[0].mxu0
        %v453 = vadd.f32 0.0, %v452
        %454 = vmatprep.mubr.bf16.mxu0 0
        %455 = vmatmul.mubr.bf16.gmra.mrb[0].mxu0 %v385
        %v456 = vpop.f32.mrb[0].mxu0
        %v457 = vadd.f32 0.0, %v456
        %v458 = vpop.f32.mrb[0].mxu0
        %v459 = vadd.f32 0.0, %v458
        %v460 = vpop.f32.mrb[0].mxu0
        %v461 = vadd.f32 0.0, %v460
        %v462 = vpop.f32.mrb[0].mxu0
        %v463 = vadd.f32 0.0, %v462
        %464 = vmatprep.mubr.bf16.mxu0 0
        %465 = vmatmul.mubr.bf16.gmra.mrb[0].mxu0 %v388
        %v466 = vpop.f32.mrb[0].mxu0
        %v467 = vadd.f32 0.0, %v466
        %v468 = vpop.f32.mrb[0].mxu0
        %v469 = vadd.f32 0.0, %v468
        %v470 = vpop.f32.mrb[0].mxu0
        %v471 = vadd.f32 0.0, %v470
        %v472 = vpop.f32.mrb[0].mxu0
        %v473 = vadd.f32 0.0, %v472
        %474 = vmatprep.mubr.bf16.mxu0 0
        %475 = vmatmul.mubr.bf16.gmra.mrb[0].mxu0 %v391
        %v476 = vpop.f32.mrb[0].mxu0
        %v477 = vadd.f32 0.0, %v476
        %v478 = vpop.f32.mrb[0].mxu0
        %v479 = vadd.f32 0.0, %v478
        %v480 = vpop.f32.mrb[0].mxu0
        %v481 = vadd.f32 0.0, %v480
        %v482 = vpop.f32.mrb[0].mxu0
        %v483 = vadd.f32 0.0, %v482
        %484 = vmatprep.mubr.bf16.mxu0 0
        %485 = vmatmul.mubr.bf16.gmra.mrb[0].mxu0 %v394
        %v486 = vpop.f32.mrb[0].mxu0
        %v487 = vadd.f32 0.0, %v486
        %v488 = vpop.f32.mrb[0].mxu0
        %v489 = vadd.f32 0.0, %v488
        %v490 = vpop.f32.mrb[0].mxu0
        %v491 = vadd.f32 0.0, %v490
        %v492 = vpop.f32.mrb[0].mxu0
        %v493 = vadd.f32 0.0, %v492
        %494 = vmatprep.mubr.bf16.mxu0 0
        %495 = vmatmul.mubr.bf16.gmra.mrb[0].mxu0 %v397
        %v496 = vpop.f32.mrb[0].mxu0
        %v497 = vadd.f32 0.0, %v496
        %v498 = vpop.f32.mrb[0].mxu0
        %v499 = vadd.f32 0.0, %v498
        %v500 = vpop.f32.mrb[0].mxu0
        %v501 = vadd.f32 0.0, %v500
        %v502 = vpop.f32.mrb[0].mxu0
        %v503 = vadd.f32 0.0, %v502
        %504 = vmatprep.mubr.bf16.mxu0 0
        %505 = vmatmul.mubr.bf16.gmra.mrb[0].mxu0 %v400
        %v506 = vpop.f32.mrb[0].mxu0
        %v507 = vadd.f32 0.0, %v506
        %v508 = vpop.f32.mrb[0].mxu0
        %v509 = vadd.f32 0.0, %v508
        %v510 = vpop.f32.mrb[0].mxu0
        %v511 = vadd.f32 0.0, %v510
        %v512 = vpop.f32.mrb[0].mxu0
        %v513 = vadd.f32 0.0, %v512
        %514 = vdwg.mxu0
        %v515 = vpack.c.bf16 %v441, %v437
        %v516 = vpack.c.bf16 %v451, %v447
        %v517 = vpack.c.bf16 %v461, %v457
        %v518 = vpack.c.bf16 %v471, %v467
        %v519 = vpack.c.bf16 %v481, %v477
        %v520 = vpack.c.bf16 %v491, %v487
        %v521 = vpack.c.bf16 %v501, %v497
        %v522 = vpack.c.bf16 %v511, %v507
        %v525 = vunpack.c.l.b16 %v293
        %v526 = vunpack.c.l.b16 %v294
        %v527 = vpack.c.b16 %v526, %v525
        %v529 = vsel %vm377, %v527, 0
        %531 = vmatprep.subr.bf16.mxu0 0
        %532 = vmatpush1.bf16.msra.mxu0 %v515
        %533 = vmatprep.subr.bf16.mxu0 0
        %534 = vmatpush1.bf16.msra.mxu0 0
        %535 = vmatprep.subr.bf16.mxu0 0
        %536 = vmatpush1.bf16.msra.mxu0 0
        %537 = vmatprep.subr.bf16.mxu0 0
        %538 = vmatpush1.bf16.msra.mxu0 0
        %539 = vmatprep.subr.bf16.mxu0 0
        %540 = vmatpush1.bf16.msra.mxu0 0
        %541 = vmatprep.subr.bf16.mxu0 0
        %542 = vmatpush1.bf16.msra.mxu0 0
        %543 = vmatprep.subr.bf16.mxu0 0
        %544 = vmatpush1.bf16.msra.mxu0 0
        %545 = vmatprep.subr.bf16.mxu0 0
        %546 = vmatpush1.bf16.msra.mxu0 0
        %547 = vmatprep.subr.bf16.mxu0 0
        %548 = vmatpush1.bf16.msra.mxu0 0
        %549 = vmatprep.subr.bf16.mxu0 0
        %550 = vmatpush1.bf16.msra.mxu0 0
        %551 = vmatprep.subr.bf16.mxu0 0
        %552 = vmatpush1.bf16.msra.mxu0 0
        %553 = vmatprep.subr.bf16.mxu0 0
        %554 = vmatpush1.bf16.msra.mxu0 0
        %555 = vmatprep.subr.bf16.mxu0 0
        %556 = vmatpush1.bf16.msra.mxu0 0
        %557 = vmatprep.subr.bf16.mxu0 0
        %558 = vmatpush1.bf16.msra.mxu0 0
        %559 = vmatprep.subr.bf16.mxu0 0
        %560 = vmatpush1.bf16.msra.mxu0 0
        %561 = vmatprep.subr.bf16.mxu0 0
        %562 = vmatpush1.bf16.msra.mxu0 0
        %563 = vmatprep.mubr.bf16.mxu0 0
        %564 = vmatmul.mubr.bf16.gmra.mrb[0].mxu0 %v529
        %v565 = vpop.f32.mrb[0].mxu0
        %v566 = vadd.f32 0.0, %v565
        %v567 = vpop.f32.mrb[0].mxu0
        %v568 = vpop.f32.mrb[0].mxu0
        %v569 = vadd.f32 0.0, %v568
        %v570 = vpop.f32.mrb[0].mxu0
        %571 = vdwg.mxu0
        %v574 = vunpack.c.l.b16 %v295
        %v575 = vunpack.c.l.b16 %v296
        %v576 = vpack.c.b16 %v575, %v574
        %v578 = vsel %vm377, %v576, 0
        %580 = vmatprep.subr.bf16.mxu0 0
        %581 = vmatpush1.bf16.msra.mxu0 %v516
        %582 = vmatprep.subr.bf16.mxu0 0
        %583 = vmatpush1.bf16.msra.mxu0 0
        %584 = vmatprep.subr.bf16.mxu0 0
        %585 = vmatpush1.bf16.msra.mxu0 0
        %586 = vmatprep.subr.bf16.mxu0 0
        %587 = vmatpush1.bf16.msra.mxu0 0
        %588 = vmatprep.subr.bf16.mxu0 0
        %589 = vmatpush1.bf16.msra.mxu0 0
        %590 = vmatprep.subr.bf16.mxu0 0
        %591 = vmatpush1.bf16.msra.mxu0 0
        %592 = vmatprep.subr.bf16.mxu0 0
        %593 = vmatpush1.bf16.msra.mxu0 0
        %594 = vmatprep.subr.bf16.mxu0 0
        %595 = vmatpush1.bf16.msra.mxu0 0
        %596 = vmatprep.subr.bf16.mxu0 0
        %597 = vmatpush1.bf16.msra.mxu0 0
        %598 = vmatprep.subr.bf16.mxu0 0
        %599 = vmatpush1.bf16.msra.mxu0 0
        %600 = vmatprep.subr.bf16.mxu0 0
        %601 = vmatpush1.bf16.msra.mxu0 0
        %602 = vmatprep.subr.bf16.mxu0 0
        %603 = vmatpush1.bf16.msra.mxu0 0
        %604 = vmatprep.subr.bf16.mxu0 0
        %605 = vmatpush1.bf16.msra.mxu0 0
        %606 = vmatprep.subr.bf16.mxu0 0
        %607 = vmatpush1.bf16.msra.mxu0 0
        %608 = vmatprep.subr.bf16.mxu0 0
        %609 = vmatpush1.bf16.msra.mxu0 0
        %610 = vmatprep.subr.bf16.mxu0 0
        %611 = vmatpush1.bf16.msra.mxu0 0
        %612 = vmatprep.mubr.bf16.mxu0 0
        %613 = vmatmul.mubr.bf16.gmra.mrb[0].mxu0 %v578
        %v614 = vpop.f32.mrb[0].mxu0
        %v615 = vadd.f32 0.0, %v614
        %v616 = vpop.f32.mrb[0].mxu0
        %v617 = vpop.f32.mrb[0].mxu0
        %v618 = vadd.f32 0.0, %v617
        %v619 = vpop.f32.mrb[0].mxu0
        %620 = vdwg.mxu0
        %v623 = vunpack.c.l.b16 %v297
        %v624 = vunpack.c.l.b16 %v298
        %v625 = vpack.c.b16 %v624, %v623
        %v627 = vsel %vm377, %v625, 0
        %629 = vmatprep.subr.bf16.mxu0 0
        %630 = vmatpush1.bf16.msra.mxu0 %v517
        %631 = vmatprep.subr.bf16.mxu0 0
        %632 = vmatpush1.bf16.msra.mxu0 0
        %633 = vmatprep.subr.bf16.mxu0 0
        %634 = vmatpush1.bf16.msra.mxu0 0
        %635 = vmatprep.subr.bf16.mxu0 0
        %636 = vmatpush1.bf16.msra.mxu0 0
        %637 = vmatprep.subr.bf16.mxu0 0
        %638 = vmatpush1.bf16.msra.mxu0 0
        %639 = vmatprep.subr.bf16.mxu0 0
        %640 = vmatpush1.bf16.msra.mxu0 0
        %641 = vmatprep.subr.bf16.mxu0 0
        %642 = vmatpush1.bf16.msra.mxu0 0
        %643 = vmatprep.subr.bf16.mxu0 0
        %644 = vmatpush1.bf16.msra.mxu0 0
        %645 = vmatprep.subr.bf16.mxu0 0
        %646 = vmatpush1.bf16.msra.mxu0 0
        %647 = vmatprep.subr.bf16.mxu0 0
        %648 = vmatpush1.bf16.msra.mxu0 0
        %649 = vmatprep.subr.bf16.mxu0 0
        %650 = vmatpush1.bf16.msra.mxu0 0
        %651 = vmatprep.subr.bf16.mxu0 0
        %652 = vmatpush1.bf16.msra.mxu0 0
        %653 = vmatprep.subr.bf16.mxu0 0
        %654 = vmatpush1.bf16.msra.mxu0 0
        %655 = vmatprep.subr.bf16.mxu0 0
        %656 = vmatpush1.bf16.msra.mxu0 0
        %657 = vmatprep.subr.bf16.mxu0 0
        %658 = vmatpush1.bf16.msra.mxu0 0
        %659 = vmatprep.subr.bf16.mxu0 0
        %660 = vmatpush1.bf16.msra.mxu0 0
        %661 = vmatprep.mubr.bf16.mxu0 0
        %662 = vmatmul.mubr.bf16.gmra.mrb[0].mxu0 %v627
        %v663 = vpop.f32.mrb[0].mxu0
        %v664 = vadd.f32 0.0, %v663
        %v665 = vpop.f32.mrb[0].mxu0
        %v666 = vpop.f32.mrb[0].mxu0
        %v667 = vadd.f32 0.0, %v666
        %v668 = vpop.f32.mrb[0].mxu0
        %669 = vdwg.mxu0
        %v672 = vunpack.c.l.b16 %v299
        %v673 = vunpack.c.l.b16 %v300
        %v674 = vpack.c.b16 %v673, %v672
        %v676 = vsel %vm377, %v674, 0
        %678 = vmatprep.subr.bf16.mxu0 0
        %679 = vmatpush1.bf16.msra.mxu0 %v518
        %680 = vmatprep.subr.bf16.mxu0 0
        %681 = vmatpush1.bf16.msra.mxu0 0
        %682 = vmatprep.subr.bf16.mxu0 0
        %683 = vmatpush1.bf16.msra.mxu0 0
        %684 = vmatprep.subr.bf16.mxu0 0
        %685 = vmatpush1.bf16.msra.mxu0 0
        %686 = vmatprep.subr.bf16.mxu0 0
        %687 = vmatpush1.bf16.msra.mxu0 0
        %688 = vmatprep.subr.bf16.mxu0 0
        %689 = vmatpush1.bf16.msra.mxu0 0
        %690 = vmatprep.subr.bf16.mxu0 0
        %691 = vmatpush1.bf16.msra.mxu0 0
        %692 = vmatprep.subr.bf16.mxu0 0
        %693 = vmatpush1.bf16.msra.mxu0 0
        %694 = vmatprep.subr.bf16.mxu0 0
        %695 = vmatpush1.bf16.msra.mxu0 0
        %696 = vmatprep.subr.bf16.mxu0 0
        %697 = vmatpush1.bf16.msra.mxu0 0
        %698 = vmatprep.subr.bf16.mxu0 0
        %699 = vmatpush1.bf16.msra.mxu0 0
        %700 = vmatprep.subr.bf16.mxu0 0
        %701 = vmatpush1.bf16.msra.mxu0 0
        %702 = vmatprep.subr.bf16.mxu0 0
        %703 = vmatpush1.bf16.msra.mxu0 0
        %704 = vmatprep.subr.bf16.mxu0 0
        %705 = vmatpush1.bf16.msra.mxu0 0
        %706 = vmatprep.subr.bf16.mxu0 0
        %707 = vmatpush1.bf16.msra.mxu0 0
        %708 = vmatprep.subr.bf16.mxu0 0
        %709 = vmatpush1.bf16.msra.mxu0 0
        %710 = vmatprep.mubr.bf16.mxu0 0
        %711 = vmatmul.mubr.bf16.gmra.mrb[0].mxu0 %v676
        %v712 = vpop.f32.mrb[0].mxu0
        %v713 = vadd.f32 0.0, %v712
        %v714 = vpop.f32.mrb[0].mxu0
        %v715 = vpop.f32.mrb[0].mxu0
        %v716 = vadd.f32 0.0, %v715
        %v717 = vpop.f32.mrb[0].mxu0
        %718 = vdwg.mxu0
        %v721 = vunpack.c.l.b16 %v301
        %v722 = vunpack.c.l.b16 %v302
        %v723 = vpack.c.b16 %v722, %v721
        %v725 = vsel %vm377, %v723, 0
        %727 = vmatprep.subr.bf16.mxu0 0
        %728 = vmatpush1.bf16.msra.mxu0 %v519
        %729 = vmatprep.subr.bf16.mxu0 0
        %730 = vmatpush1.bf16.msra.mxu0 0
        %731 = vmatprep.subr.bf16.mxu0 0
        %732 = vmatpush1.bf16.msra.mxu0 0
        %733 = vmatprep.subr.bf16.mxu0 0
        %734 = vmatpush1.bf16.msra.mxu0 0
        %735 = vmatprep.subr.bf16.mxu0 0
        %736 = vmatpush1.bf16.msra.mxu0 0
        %737 = vmatprep.subr.bf16.mxu0 0
        %738 = vmatpush1.bf16.msra.mxu0 0
        %739 = vmatprep.subr.bf16.mxu0 0
        %740 = vmatpush1.bf16.msra.mxu0 0
        %741 = vmatprep.subr.bf16.mxu0 0
        %742 = vmatpush1.bf16.msra.mxu0 0
        %743 = vmatprep.subr.bf16.mxu0 0
        %744 = vmatpush1.bf16.msra.mxu0 0
        %745 = vmatprep.subr.bf16.mxu0 0
        %746 = vmatpush1.bf16.msra.mxu0 0
        %747 = vmatprep.subr.bf16.mxu0 0
        %748 = vmatpush1.bf16.msra.mxu0 0
        %749 = vmatprep.subr.bf16.mxu0 0
        %750 = vmatpush1.bf16.msra.mxu0 0
        %751 = vmatprep.subr.bf16.mxu0 0
        %752 = vmatpush1.bf16.msra.mxu0 0
        %753 = vmatprep.subr.bf16.mxu0 0
        %754 = vmatpush1.bf16.msra.mxu0 0
        %755 = vmatprep.subr.bf16.mxu0 0
        %756 = vmatpush1.bf16.msra.mxu0 0
        %757 = vmatprep.subr.bf16.mxu0 0
        %758 = vmatpush1.bf16.msra.mxu0 0
        %759 = vmatprep.mubr.bf16.mxu0 0
        %760 = vmatmul.mubr.bf16.gmra.mrb[0].mxu0 %v725
        %v761 = vpop.f32.mrb[0].mxu0
        %v762 = vadd.f32 0.0, %v761
        %v763 = vpop.f32.mrb[0].mxu0
        %v764 = vpop.f32.mrb[0].mxu0
        %v765 = vadd.f32 0.0, %v764
        %v766 = vpop.f32.mrb[0].mxu0
        %767 = vdwg.mxu0
        %v770 = vunpack.c.l.b16 %v303
        %v771 = vunpack.c.l.b16 %v304
        %v772 = vpack.c.b16 %v771, %v770
        %v774 = vsel %vm377, %v772, 0
        %776 = vmatprep.subr.bf16.mxu0 0
        %777 = vmatpush1.bf16.msra.mxu0 %v520
        %778 = vmatprep.subr.bf16.mxu0 0
        %779 = vmatpush1.bf16.msra.mxu0 0
        %780 = vmatprep.subr.bf16.mxu0 0
        %781 = vmatpush1.bf16.msra.mxu0 0
        %782 = vmatprep.subr.bf16.mxu0 0
        %783 = vmatpush1.bf16.msra.mxu0 0
        %784 = vmatprep.subr.bf16.mxu0 0
        %785 = vmatpush1.bf16.msra.mxu0 0
        %786 = vmatprep.subr.bf16.mxu0 0
        %787 = vmatpush1.bf16.msra.mxu0 0
        %788 = vmatprep.subr.bf16.mxu0 0
        %789 = vmatpush1.bf16.msra.mxu0 0
        %790 = vmatprep.subr.bf16.mxu0 0
        %791 = vmatpush1.bf16.msra.mxu0 0
        %792 = vmatprep.subr.bf16.mxu0 0
        %793 = vmatpush1.bf16.msra.mxu0 0
        %794 = vmatprep.subr.bf16.mxu0 0
        %795 = vmatpush1.bf16.msra.mxu0 0
        %796 = vmatprep.subr.bf16.mxu0 0
        %797 = vmatpush1.bf16.msra.mxu0 0
        %798 = vmatprep.subr.bf16.mxu0 0
        %799 = vmatpush1.bf16.msra.mxu0 0
        %800 = vmatprep.subr.bf16.mxu0 0
        %801 = vmatpush1.bf16.msra.mxu0 0
        %802 = vmatprep.subr.bf16.mxu0 0
        %803 = vmatpush1.bf16.msra.mxu0 0
        %804 = vmatprep.subr.bf16.mxu0 0
        %805 = vmatpush1.bf16.msra.mxu0 0
        %806 = vmatprep.subr.bf16.mxu0 0
        %807 = vmatpush1.bf16.msra.mxu0 0
        %808 = vmatprep.mubr.bf16.mxu0 0
        %809 = vmatmul.mubr.bf16.gmra.mrb[0].mxu0 %v774
        %v810 = vpop.f32.mrb[0].mxu0
        %v811 = vadd.f32 0.0, %v810
        %v812 = vpop.f32.mrb[0].mxu0
        %v813 = vpop.f32.mrb[0].mxu0
        %v814 = vadd.f32 0.0, %v813
        %v815 = vpop.f32.mrb[0].mxu0
        %816 = vdwg.mxu0
        %v819 = vunpack.c.l.b16 %v305
        %v820 = vunpack.c.l.b16 %v306
        %v821 = vpack.c.b16 %v820, %v819
        %v823 = vsel %vm377, %v821, 0
        %825 = vmatprep.subr.bf16.mxu0 0
        %826 = vmatpush1.bf16.msra.mxu0 %v521
        %827 = vmatprep.subr.bf16.mxu0 0
        %828 = vmatpush1.bf16.msra.mxu0 0
        %829 = vmatprep.subr.bf16.mxu0 0
        %830 = vmatpush1.bf16.msra.mxu0 0
        %831 = vmatprep.subr.bf16.mxu0 0
        %832 = vmatpush1.bf16.msra.mxu0 0
        %833 = vmatprep.subr.bf16.mxu0 0
        %834 = vmatpush1.bf16.msra.mxu0 0
        %835 = vmatprep.subr.bf16.mxu0 0
        %836 = vmatpush1.bf16.msra.mxu0 0
        %837 = vmatprep.subr.bf16.mxu0 0
        %838 = vmatpush1.bf16.msra.mxu0 0
        %839 = vmatprep.subr.bf16.mxu0 0
        %840 = vmatpush1.bf16.msra.mxu0 0
        %841 = vmatprep.subr.bf16.mxu0 0
        %842 = vmatpush1.bf16.msra.mxu0 0
        %843 = vmatprep.subr.bf16.mxu0 0
        %844 = vmatpush1.bf16.msra.mxu0 0
        %845 = vmatprep.subr.bf16.mxu0 0
        %846 = vmatpush1.bf16.msra.mxu0 0
        %847 = vmatprep.subr.bf16.mxu0 0
        %848 = vmatpush1.bf16.msra.mxu0 0
        %849 = vmatprep.subr.bf16.mxu0 0
        %850 = vmatpush1.bf16.msra.mxu0 0
        %851 = vmatprep.subr.bf16.mxu0 0
        %852 = vmatpush1.bf16.msra.mxu0 0
        %853 = vmatprep.subr.bf16.mxu0 0
        %854 = vmatpush1.bf16.msra.mxu0 0
        %855 = vmatprep.subr.bf16.mxu0 0
        %856 = vmatpush1.bf16.msra.mxu0 0
        %857 = vmatprep.mubr.bf16.mxu0 0
        %858 = vmatmul.mubr.bf16.gmra.mrb[0].mxu0 %v823
        %v859 = vpop.f32.mrb[0].mxu0
        %v860 = vadd.f32 0.0, %v859
        %v861 = vpop.f32.mrb[0].mxu0
        %v862 = vpop.f32.mrb[0].mxu0
        %v863 = vadd.f32 0.0, %v862
        %v864 = vpop.f32.mrb[0].mxu0
        %865 = vdwg.mxu0
        %v868 = vunpack.c.l.b16 %v307
        %v869 = vunpack.c.l.b16 %v308
        %v870 = vpack.c.b16 %v869, %v868
        %v872 = vsel %vm377, %v870, 0
        %874 = vmatprep.subr.bf16.mxu0 0
        %875 = vmatpush1.bf16.msra.mxu0 %v522
        %876 = vmatprep.subr.bf16.mxu0 0
        %877 = vmatpush1.bf16.msra.mxu0 0
        %878 = vmatprep.subr.bf16.mxu0 0
        %879 = vmatpush1.bf16.msra.mxu0 0
        %880 = vmatprep.subr.bf16.mxu0 0
        %881 = vmatpush1.bf16.msra.mxu0 0
        %882 = vmatprep.subr.bf16.mxu0 0
        %883 = vmatpush1.bf16.msra.mxu0 0
        %884 = vmatprep.subr.bf16.mxu0 0
        %885 = vmatpush1.bf16.msra.mxu0 0
        %886 = vmatprep.subr.bf16.mxu0 0
        %887 = vmatpush1.bf16.msra.mxu0 0
        %888 = vmatprep.subr.bf16.mxu0 0
        %889 = vmatpush1.bf16.msra.mxu0 0
        %890 = vmatprep.subr.bf16.mxu0 0
        %891 = vmatpush1.bf16.msra.mxu0 0
        %892 = vmatprep.subr.bf16.mxu0 0
        %893 = vmatpush1.bf16.msra.mxu0 0
        %894 = vmatprep.subr.bf16.mxu0 0
        %895 = vmatpush1.bf16.msra.mxu0 0
        %896 = vmatprep.subr.bf16.mxu0 0
        %897 = vmatpush1.bf16.msra.mxu0 0
        %898 = vmatprep.subr.bf16.mxu0 0
        %899 = vmatpush1.bf16.msra.mxu0 0
        %900 = vmatprep.subr.bf16.mxu0 0
        %901 = vmatpush1.bf16.msra.mxu0 0
        %902 = vmatprep.subr.bf16.mxu0 0
        %903 = vmatpush1.bf16.msra.mxu0 0
        %904 = vmatprep.subr.bf16.mxu0 0
        %905 = vmatpush1.bf16.msra.mxu0 0
        %906 = vmatprep.mubr.bf16.mxu0 0
        %907 = vmatmul.mubr.bf16.gmra.mrb[0].mxu0 %v872
        %v908 = vpop.f32.mrb[0].mxu0
        %v909 = vadd.f32 0.0, %v908
        %v910 = vpop.f32.mrb[0].mxu0
        %v911 = vpop.f32.mrb[0].mxu0
        %v912 = vadd.f32 0.0, %v911
        %v913 = vpop.f32.mrb[0].mxu0
        %914 = vdwg.mxu0
        %v915 = vmax.f32 %v566, 0.0
        %v916 = vmax.f32 %v569, 0.0
        %v917 = vmax.f32 %v615, 0.0
        %v918 = vmax.f32 %v618, 0.0
        %v919 = vmax.f32 %v664, 0.0
        %v920 = vmax.f32 %v667, 0.0
        %v921 = vmax.f32 %v713, 0.0
        %v922 = vmax.f32 %v716, 0.0
        %v923 = vmax.f32 %v762, 0.0
        %v924 = vmax.f32 %v765, 0.0
        %v925 = vmax.f32 %v811, 0.0
        %v926 = vmax.f32 %v814, 0.0
        %v927 = vmax.f32 %v860, 0.0
        %v928 = vmax.f32 %v863, 0.0
        %v929 = vmax.f32 %v909, 0.0
        %v930 = vmax.f32 %v912, 0.0
        %v931 = vld [vmem:[%s3] sm:$0x1]
        %v932 = vld [vmem:[%s3 + $0x1] sm:$0x1]
        %933 = vadd.xlane.f32.xlu0 %v439
        %v934 = vpop.xlane.xlu0 %933
        %935 = vadd.xlane.f32.xlu0 %v443
        %v936 = vpop.xlane.xlu0 %935
        %937 = vadd.xlane.f32.xlu0 %v449
        %v938 = vpop.xlane.xlu0 %937
        %939 = vadd.xlane.f32.xlu0 %v453
        %v940 = vpop.xlane.xlu0 %939
        %941 = vadd.xlane.f32.xlu0 %v459
        %v942 = vpop.xlane.xlu0 %941
        %943 = vadd.xlane.f32.xlu0 %v463
        %v944 = vpop.xlane.xlu0 %943
        %945 = vadd.xlane.f32.xlu0 %v469
        %v946 = vpop.xlane.xlu0 %945
        %947 = vadd.xlane.f32.xlu0 %v473
        %v948 = vpop.xlane.xlu0 %947
        %949 = vadd.xlane.f32.xlu0 %v479
        %v950 = vpop.xlane.xlu0 %949
        %951 = vadd.xlane.f32.xlu0 %v483
        %v952 = vpop.xlane.xlu0 %951
        %953 = vadd.xlane.f32.xlu0 %v489
        %v954 = vpop.xlane.xlu0 %953
        %955 = vadd.xlane.f32.xlu0 %v493
        %v956 = vpop.xlane.xlu0 %955
        %957 = vadd.xlane.f32.xlu0 %v499
        %v958 = vpop.xlane.xlu0 %957
        %959 = vadd.xlane.f32.xlu0 %v503
        %v960 = vpop.xlane.xlu0 %959
        %961 = vadd.xlane.f32.xlu0 %v509
        %v962 = vpop.xlane.xlu0 %961
        %963 = vadd.xlane.f32.xlu0 %v513
        %v964 = vpop.xlane.xlu0 %963
        %v965 = vrcp.pop 128.0
        %v966 = vmul.f32 %v934, %v965
        %v967 = vmul.f32 %v936, %v965
        %v968 = vmul.f32 %v938, %v965
        %v969 = vmul.f32 %v940, %v965
        %v970 = vmul.f32 %v942, %v965
        %v971 = vmul.f32 %v944, %v965
        %v972 = vmul.f32 %v946, %v965
        %v973 = vmul.f32 %v948, %v965
        %v974 = vmul.f32 %v950, %v965
        %v975 = vmul.f32 %v952, %v965
        %v976 = vmul.f32 %v954, %v965
        %v977 = vmul.f32 %v956, %v965
        %v978 = vmul.f32 %v958, %v965
        %v979 = vmul.f32 %v960, %v965
        %v980 = vmul.f32 %v962, %v965
        %v981 = vmul.f32 %v964, %v965
        %v982 = vmul.f32 %v439, %v439
        %v983 = vmul.f32 %v443, %v443
        %v984 = vmul.f32 %v449, %v449
        %v985 = vmul.f32 %v453, %v453
        %v986 = vmul.f32 %v459, %v459
        %v987 = vmul.f32 %v463, %v463
        %v988 = vmul.f32 %v469, %v469
        %v989 = vmul.f32 %v473, %v473
        %v990 = vmul.f32 %v479, %v479
        %v991 = vmul.f32 %v483, %v483
        %v992 = vmul.f32 %v489, %v489
        %v993 = vmul.f32 %v493, %v493
        %v994 = vmul.f32 %v499, %v499
        %v995 = vmul.f32 %v503, %v503
        %v996 = vmul.f32 %v509, %v509
        %v997 = vmul.f32 %v513, %v513
        %998 = vadd.xlane.f32.xlu0 %v982
        %v999 = vpop.xlane.xlu0 %998
        %1000 = vadd.xlane.f32.xlu0 %v983
        %v1001 = vpop.xlane.xlu0 %1000
        %1002 = vadd.xlane.f32.xlu0 %v984
        %v1003 = vpop.xlane.xlu0 %1002
        %1004 = vadd.xlane.f32.xlu0 %v985
        %v1005 = vpop.xlane.xlu0 %1004
        %1006 = vadd.xlane.f32.xlu0 %v986
        %v1007 = vpop.xlane.xlu0 %1006
        %1008 = vadd.xlane.f32.xlu0 %v987
        %v1009 = vpop.xlane.xlu0 %1008
        %1010 = vadd.xlane.f32.xlu0 %v988
        %v1011 = vpop.xlane.xlu0 %1010
        %1012 = vadd.xlane.f32.xlu0 %v989
        %v1013 = vpop.xlane.xlu0 %1012
        %1014 = vadd.xlane.f32.xlu0 %v990
        %v1015 = vpop.xlane.xlu0 %1014
        %1016 = vadd.xlane.f32.xlu0 %v991
        %v1017 = vpop.xlane.xlu0 %1016
        %1018 = vadd.xlane.f32.xlu0 %v992
        %v1019 = vpop.xlane.xlu0 %1018
        %1020 = vadd.xlane.f32.xlu0 %v993
        %v1021 = vpop.xlane.xlu0 %1020
        %1022 = vadd.xlane.f32.xlu0 %v994
        %v1023 = vpop.xlane.xlu0 %1022
        %1024 = vadd.xlane.f32.xlu0 %v995
        %v1025 = vpop.xlane.xlu0 %1024
        %1026 = vadd.xlane.f32.xlu0 %v996
        %v1027 = vpop.xlane.xlu0 %1026
        %1028 = vadd.xlane.f32.xlu0 %v997
        %v1029 = vpop.xlane.xlu0 %1028
        %v1030 = vmul.f32 %v999, %v965
        %v1031 = vmul.f32 %v1001, %v965
        %v1032 = vmul.f32 %v1003, %v965
        %v1033 = vmul.f32 %v1005, %v965
        %v1034 = vmul.f32 %v1007, %v965
        %v1035 = vmul.f32 %v1009, %v965
        %v1036 = vmul.f32 %v1011, %v965
        %v1037 = vmul.f32 %v1013, %v965
        %v1038 = vmul.f32 %v1015, %v965
        %v1039 = vmul.f32 %v1017, %v965
        %v1040 = vmul.f32 %v1019, %v965
        %v1041 = vmul.f32 %v1021, %v965
        %v1042 = vmul.f32 %v1023, %v965
        %v1043 = vmul.f32 %v1025, %v965
        %v1044 = vmul.f32 %v1027, %v965
        %v1045 = vmul.f32 %v1029, %v965
        %v1046 = vmul.f32 %v966, %v966
        %v1047 = vmul.f32 %v967, %v967
        %v1048 = vmul.f32 %v968, %v968
        %v1049 = vmul.f32 %v969, %v969
        %v1050 = vmul.f32 %v970, %v970
        %v1051 = vmul.f32 %v971, %v971
        %v1052 = vmul.f32 %v972, %v972
        %v1053 = vmul.f32 %v973, %v973
        %v1054 = vmul.f32 %v974, %v974
        %v1055 = vmul.f32 %v975, %v975
        %v1056 = vmul.f32 %v976, %v976
        %v1057 = vmul.f32 %v977, %v977
        %v1058 = vmul.f32 %v978, %v978
        %v1059 = vmul.f32 %v979, %v979
        %v1060 = vmul.f32 %v980, %v980
        %v1061 = vmul.f32 %v981, %v981
        %v1062 = vsub.f32 %v1030, %v1046
        %v1063 = vsub.f32 %v1031, %v1047
        %v1064 = vsub.f32 %v1032, %v1048
        %v1065 = vsub.f32 %v1033, %v1049
        %v1066 = vsub.f32 %v1034, %v1050
        %v1067 = vsub.f32 %v1035, %v1051
        %v1068 = vsub.f32 %v1036, %v1052
        %v1069 = vsub.f32 %v1037, %v1053
        %v1070 = vsub.f32 %v1038, %v1054
        %v1071 = vsub.f32 %v1039, %v1055
        %v1072 = vsub.f32 %v1040, %v1056
        %v1073 = vsub.f32 %v1041, %v1057
        %v1074 = vsub.f32 %v1042, %v1058
        %v1075 = vsub.f32 %v1043, %v1059
        %v1076 = vsub.f32 %v1044, %v1060
        %v1077 = vsub.f32 %v1045, %v1061
        %v1078 = vmax.f32 %v1062, 0.0
        %v1079 = vmax.f32 %v1063, 0.0
        %v1080 = vmax.f32 %v1064, 0.0
        %v1081 = vmax.f32 %v1065, 0.0
        %v1082 = vmax.f32 %v1066, 0.0
        %v1083 = vmax.f32 %v1067, 0.0
        %v1084 = vmax.f32 %v1068, 0.0
        %v1085 = vmax.f32 %v1069, 0.0
        %v1086 = vmax.f32 %v1070, 0.0
        %v1087 = vmax.f32 %v1071, 0.0
        %v1088 = vmax.f32 %v1072, 0.0
        %v1089 = vmax.f32 %v1073, 0.0
        %v1090 = vmax.f32 %v1074, 0.0
        %v1091 = vmax.f32 %v1075, 0.0
        %v1092 = vmax.f32 %v1076, 0.0
        %v1093 = vmax.f32 %v1077, 0.0
        %v1094 = vsub.f32 %v439, %v966
        %v1095 = vsub.f32 %v443, %v967
        %v1096 = vsub.f32 %v449, %v968
        %v1097 = vsub.f32 %v453, %v969
        %v1098 = vsub.f32 %v459, %v970
        %v1099 = vsub.f32 %v463, %v971
        %v1100 = vsub.f32 %v469, %v972
        %v1101 = vsub.f32 %v473, %v973
        %v1102 = vsub.f32 %v479, %v974
        %v1103 = vsub.f32 %v483, %v975
        %v1104 = vsub.f32 %v489, %v976
        %v1105 = vsub.f32 %v493, %v977
        %v1106 = vsub.f32 %v499, %v978
        %v1107 = vsub.f32 %v503, %v979
        %v1108 = vsub.f32 %v509, %v980
        %v1109 = vsub.f32 %v513, %v981
        %v1110 = vadd.f32 %v1078, 1e-05
        %v1111 = vadd.f32 %v1079, 1e-05
        %v1112 = vadd.f32 %v1080, 1e-05
        %v1113 = vadd.f32 %v1081, 1e-05
        %v1114 = vadd.f32 %v1082, 1e-05
        %v1115 = vadd.f32 %v1083, 1e-05
        %v1116 = vadd.f32 %v1084, 1e-05
        %v1117 = vadd.f32 %v1085, 1e-05
        %v1118 = vadd.f32 %v1086, 1e-05
        %v1119 = vadd.f32 %v1087, 1e-05
        %v1120 = vadd.f32 %v1088, 1e-05
        %v1121 = vadd.f32 %v1089, 1e-05
        %v1122 = vadd.f32 %v1090, 1e-05
        %v1123 = vadd.f32 %v1091, 1e-05
        %v1124 = vadd.f32 %v1092, 1e-05
        %v1125 = vadd.f32 %v1093, 1e-05
        %v1126 = vrsqrt.pop %v1110
        %v1127 = vrsqrt.pop %v1111
        %v1128 = vrsqrt.pop %v1112
        %v1129 = vrsqrt.pop %v1113
        %v1130 = vrsqrt.pop %v1114
        %v1131 = vrsqrt.pop %v1115
        %v1132 = vrsqrt.pop %v1116
        %v1133 = vrsqrt.pop %v1117
        %v1134 = vrsqrt.pop %v1118
        %v1135 = vrsqrt.pop %v1119
        %v1136 = vrsqrt.pop %v1120
        %v1137 = vrsqrt.pop %v1121
        %v1138 = vrsqrt.pop %v1122
        %v1139 = vrsqrt.pop %v1123
        %v1140 = vrsqrt.pop %v1124
        %v1141 = vrsqrt.pop %v1125
        %v1142 = vmul.f32 %v1094, %v1126
        %v1143 = vmul.f32 %v1095, %v1127
        %v1144 = vmul.f32 %v1096, %v1128
        %v1145 = vmul.f32 %v1097, %v1129
        %v1146 = vmul.f32 %v1098, %v1130
        %v1147 = vmul.f32 %v1099, %v1131
        %v1148 = vmul.f32 %v1100, %v1132
        %v1149 = vmul.f32 %v1101, %v1133
        %v1150 = vmul.f32 %v1102, %v1134
        %v1151 = vmul.f32 %v1103, %v1135
        %v1152 = vmul.f32 %v1104, %v1136
        %v1153 = vmul.f32 %v1105, %v1137
        %v1154 = vmul.f32 %v1106, %v1138
        %v1155 = vmul.f32 %v1107, %v1139
        %v1156 = vmul.f32 %v1108, %v1140
        %v1157 = vmul.f32 %v1109, %v1141
        %v1158 = vlaneseq
        %v1159 = vshrl.u32 %v1158, 7
        %v1160 = vsub.s32 0, %v1159
        %v1161 = vrot.slane %v931, %v1160
        %v1162 = vmul.f32 %v1142, %v1161
        %v1163 = vmul.f32 %v1143, %v1161
        %v1164 = vmul.f32 %v1144, %v1161
        %v1165 = vmul.f32 %v1145, %v1161
        %v1166 = vmul.f32 %v1146, %v1161
        %v1167 = vmul.f32 %v1147, %v1161
        %v1168 = vmul.f32 %v1148, %v1161
        %v1169 = vmul.f32 %v1149, %v1161
        %v1170 = vmul.f32 %v1150, %v1161
        %v1171 = vmul.f32 %v1151, %v1161
        %v1172 = vmul.f32 %v1152, %v1161
        %v1173 = vmul.f32 %v1153, %v1161
        %v1174 = vmul.f32 %v1154, %v1161
        %v1175 = vmul.f32 %v1155, %v1161
        %v1176 = vmul.f32 %v1156, %v1161
        %v1177 = vmul.f32 %v1157, %v1161
        %v1178 = vlaneseq
        %v1179 = vshrl.u32 %v1178, 7
        %v1180 = vsub.s32 0, %v1179
        %v1181 = vrot.slane %v932, %v1180
        %v1182 = vadd.f32 %v1162, %v1181
        %v1183 = vadd.f32 %v1163, %v1181
        %v1184 = vadd.f32 %v1164, %v1181
        %v1185 = vadd.f32 %v1165, %v1181
        %v1186 = vadd.f32 %v1166, %v1181
        %v1187 = vadd.f32 %v1167, %v1181
        %v1188 = vadd.f32 %v1168, %v1181
        %v1189 = vadd.f32 %v1169, %v1181
        %v1190 = vadd.f32 %v1170, %v1181
        %v1191 = vadd.f32 %v1171, %v1181
        %v1192 = vadd.f32 %v1172, %v1181
        %v1193 = vadd.f32 %v1173, %v1181
        %v1194 = vadd.f32 %v1174, %v1181
        %v1195 = vadd.f32 %v1175, %v1181
        %v1196 = vadd.f32 %v1176, %v1181
        %v1197 = vadd.f32 %v1177, %v1181
        %v1198 = vmax.f32 %v1182, 0.0
        %v1199 = vmax.f32 %v1183, 0.0
        %v1200 = vmax.f32 %v1184, 0.0
        %v1201 = vmax.f32 %v1185, 0.0
        %v1202 = vmax.f32 %v1186, 0.0
        %v1203 = vmax.f32 %v1187, 0.0
        %v1204 = vmax.f32 %v1188, 0.0
        %v1205 = vmax.f32 %v1189, 0.0
        %v1206 = vmax.f32 %v1190, 0.0
        %v1207 = vmax.f32 %v1191, 0.0
        %v1208 = vmax.f32 %v1192, 0.0
        %v1209 = vmax.f32 %v1193, 0.0
        %v1210 = vmax.f32 %v1194, 0.0
        %v1211 = vmax.f32 %v1195, 0.0
        %v1212 = vmax.f32 %v1196, 0.0
        %v1213 = vmax.f32 %v1197, 0.0
        %v1214 = vld [vmem:[#allocation2] sm:$0xf]
        %v1215 = vld [vmem:[#allocation2 + $0x4] sm:$0xf]
        %v1216 = vld [vmem:[#allocation2 + $0x8] sm:$0xf]
        %v1217 = vld [vmem:[#allocation2 + $0xc] sm:$0xf]
        %v1218 = vld [vmem:[#allocation2 + $0x10] sm:$0xf]
        %v1219 = vld [vmem:[#allocation2 + $0x14] sm:$0xf]
        %v1220 = vld [vmem:[#allocation2 + $0x18] sm:$0xf]
        %v1221 = vld [vmem:[#allocation2 + $0x1c] sm:$0xf]
        %v1222 = vld [vmem:[#allocation2 + $0x20] sm:$0xf]
        %v1223 = vld [vmem:[#allocation2 + $0x24] sm:$0xf]
        %v1224 = vld [vmem:[#allocation2 + $0x28] sm:$0xf]
        %v1225 = vld [vmem:[#allocation2 + $0x2c] sm:$0xf]
        %v1226 = vld [vmem:[#allocation2 + $0x30] sm:$0xf]
        %v1227 = vld [vmem:[#allocation2 + $0x34] sm:$0xf]
        %v1228 = vld [vmem:[#allocation2 + $0x38] sm:$0xf]
        %v1229 = vld [vmem:[#allocation2 + $0x3c] sm:$0xf]
        %v1230 = vpack.c.bf16 %v916, %v915
        %v1231 = vpack.c.bf16 %v918, %v917
        %v1232 = vpack.c.bf16 %v920, %v919
        %v1233 = vpack.c.bf16 %v922, %v921
        %v1234 = vpack.c.bf16 %v924, %v923
        %v1235 = vpack.c.bf16 %v926, %v925
        %v1236 = vpack.c.bf16 %v928, %v927
        %v1237 = vpack.c.bf16 %v930, %v929
        %v1238 = vld [vmem:[#allocation2 + $0x40] sm:$0xf]
        %v1239 = vld [vmem:[#allocation2 + $0x44] sm:$0xf]
        %v1240 = vld [vmem:[#allocation2 + $0x48] sm:$0xf]
        %v1241 = vld [vmem:[#allocation2 + $0x4c] sm:$0xf]
        %v1242 = vld [vmem:[#allocation2 + $0x50] sm:$0xf]
        %v1243 = vld [vmem:[#allocation2 + $0x54] sm:$0xf]
        %v1244 = vld [vmem:[#allocation2 + $0x58] sm:$0xf]
        %v1245 = vld [vmem:[#allocation2 + $0x5c] sm:$0xf]
        %v1246 = vld [vmem:[#allocation2 + $0x60] sm:$0xf]
        %v1247 = vld [vmem:[#allocation2 + $0x64] sm:$0xf]
        %v1248 = vld [vmem:[#allocation2 + $0x68] sm:$0xf]
        %v1249 = vld [vmem:[#allocation2 + $0x6c] sm:$0xf]
        %v1250 = vld [vmem:[#allocation2 + $0x70] sm:$0xf]
        %v1251 = vld [vmem:[#allocation2 + $0x74] sm:$0xf]
        %v1252 = vld [vmem:[#allocation2 + $0x78] sm:$0xf]
        %v1253 = vld [vmem:[#allocation2 + $0x7c] sm:$0xf]
        %v1254 = vpack.c.bf16 %v1199, %v1198
        %v1255 = vpack.c.bf16 %v1201, %v1200
        %v1256 = vpack.c.bf16 %v1203, %v1202
        %v1257 = vpack.c.bf16 %v1205, %v1204
        %v1258 = vpack.c.bf16 %v1207, %v1206
        %v1259 = vpack.c.bf16 %v1209, %v1208
        %v1260 = vpack.c.bf16 %v1211, %v1210
        %v1261 = vpack.c.bf16 %v1213, %v1212
        %v1278 = vunpack.c.l.b16 %v1238
        %v1279 = vunpack.c.l.b16 %v1239
        %v1280 = vunpack.c.l.b16 %v1240
        %v1281 = vunpack.c.l.b16 %v1241
        %v1282 = vunpack.c.l.b16 %v1242
        %v1283 = vunpack.c.l.b16 %v1243
        %v1284 = vunpack.c.l.b16 %v1244
        %v1285 = vunpack.c.l.b16 %v1245
        %v1286 = vunpack.c.l.b16 %v1246
        %v1287 = vunpack.c.l.b16 %v1247
        %v1288 = vunpack.c.l.b16 %v1248
        %v1289 = vunpack.c.l.b16 %v1249
        %v1290 = vunpack.c.l.b16 %v1250
        %v1291 = vunpack.c.l.b16 %v1251
        %v1292 = vunpack.c.l.b16 %v1252
        %v1293 = vunpack.c.l.b16 %v1253
        %v1294 = vpack.c.b16 %v1279, %v1278
        %v1295 = vpack.c.b16 %v1281, %v1280
        %v1296 = vpack.c.b16 %v1283, %v1282
        %v1297 = vpack.c.b16 %v1285, %v1284
        %v1298 = vpack.c.b16 %v1287, %v1286
        %v1299 = vpack.c.b16 %v1289, %v1288
        %v1300 = vpack.c.b16 %v1291, %v1290
        %v1301 = vpack.c.b16 %v1293, %v1292
        %1310 = vmatprep.subr.bf16.mxu0 0
        %1311 = vmatpush1.bf16.msra.mxu0 %v1294
        %1312 = vmatprep.subr.bf16.mxu0 0
        %1313 = vmatpush1.bf16.msra.mxu0 %v1295
        %1314 = vmatprep.subr.bf16.mxu0 0
        %1315 = vmatpush1.bf16.msra.mxu0 %v1296
        %1316 = vmatprep.subr.bf16.mxu0 0
        %1317 = vmatpush1.bf16.msra.mxu0 %v1297
        %1318 = vmatprep.subr.bf16.mxu0 0
        %1319 = vmatpush1.bf16.msra.mxu0 %v1298
        %1320 = vmatprep.subr.bf16.mxu0 0
        %1321 = vmatpush1.bf16.msra.mxu0 %v1299
        %1322 = vmatprep.subr.bf16.mxu0 0
        %1323 = vmatpush1.bf16.msra.mxu0 %v1300
        %1324 = vmatprep.subr.bf16.mxu0 0
        %1325 = vmatpush1.bf16.msra.mxu0 %v1301
        %1326 = vmatprep.subr.bf16.mxu0 0
        %1327 = vmatpush1.bf16.msra.mxu0 0
        %1328 = vmatprep.subr.bf16.mxu0 0
        %1329 = vmatpush1.bf16.msra.mxu0 0
        %1330 = vmatprep.subr.bf16.mxu0 0
        %1331 = vmatpush1.bf16.msra.mxu0 0
        %1332 = vmatprep.subr.bf16.mxu0 0
        %1333 = vmatpush1.bf16.msra.mxu0 0
        %1334 = vmatprep.subr.bf16.mxu0 0
        %1335 = vmatpush1.bf16.msra.mxu0 0
        %1336 = vmatprep.subr.bf16.mxu0 0
        %1337 = vmatpush1.bf16.msra.mxu0 0
        %1338 = vmatprep.subr.bf16.mxu0 0
        %1339 = vmatpush1.bf16.msra.mxu0 0
        %1340 = vmatprep.subr.bf16.mxu0 0
        %1341 = vmatpush1.bf16.msra.mxu0 0
        %1342 = vmatprep.mubr.bf16.mxu0 0
        %1343 = vmatmul.mubr.bf16.gmra.mrb[0].mxu0 %v1254
        %v1344 = vpop.f32.mrb[0].mxu0
        %v1345 = vadd.f32 0.0, %v1344
        %v1346 = vpop.f32.mrb[0].mxu0
        %v1347 = vpop.f32.mrb[0].mxu0
        %v1348 = vadd.f32 0.0, %v1347
        %v1349 = vpop.f32.mrb[0].mxu0
        %1350 = vmatprep.mubr.bf16.mxu0 0
        %1351 = vmatmul.mubr.bf16.gmra.mrb[0].mxu0 %v1255
        %v1352 = vpop.f32.mrb[0].mxu0
        %v1353 = vadd.f32 0.0, %v1352
        %v1354 = vpop.f32.mrb[0].mxu0
        %v1355 = vpop.f32.mrb[0].mxu0
        %v1356 = vadd.f32 0.0, %v1355
        %v1357 = vpop.f32.mrb[0].mxu0
        %1358 = vmatprep.mubr.bf16.mxu0 0
        %1359 = vmatmul.mubr.bf16.gmra.mrb[0].mxu0 %v1256
        %v1360 = vpop.f32.mrb[0].mxu0
        %v1361 = vadd.f32 0.0, %v1360
        %v1362 = vpop.f32.mrb[0].mxu0
        %v1363 = vpop.f32.mrb[0].mxu0
        %v1364 = vadd.f32 0.0, %v1363
        %v1365 = vpop.f32.mrb[0].mxu0
        %1366 = vmatprep.mubr.bf16.mxu0 0
        %1367 = vmatmul.mubr.bf16.gmra.mrb[0].mxu0 %v1257
        %v1368 = vpop.f32.mrb[0].mxu0
        %v1369 = vadd.f32 0.0, %v1368
        %v1370 = vpop.f32.mrb[0].mxu0
        %v1371 = vpop.f32.mrb[0].mxu0
        %v1372 = vadd.f32 0.0, %v1371
        %v1373 = vpop.f32.mrb[0].mxu0
        %1374 = vmatprep.mubr.bf16.mxu0 0
        %1375 = vmatmul.mubr.bf16.gmra.mrb[0].mxu0 %v1258
        %v1376 = vpop.f32.mrb[0].mxu0
        %v1377 = vadd.f32 0.0, %v1376
        %v1378 = vpop.f32.mrb[0].mxu0
        %v1379 = vpop.f32.mrb[0].mxu0
        %v1380 = vadd.f32 0.0, %v1379
        %v1381 = vpop.f32.mrb[0].mxu0
        %1382 = vmatprep.mubr.bf16.mxu0 0
        %1383 = vmatmul.mubr.bf16.gmra.mrb[0].mxu0 %v1259
        %v1384 = vpop.f32.mrb[0].mxu0
        %v1385 = vadd.f32 0.0, %v1384
        %v1386 = vpop.f32.mrb[0].mxu0
        %v1387 = vpop.f32.mrb[0].mxu0
        %v1388 = vadd.f32 0.0, %v1387
        %v1389 = vpop.f32.mrb[0].mxu0
        %1390 = vmatprep.mubr.bf16.mxu0 0
        %1391 = vmatmul.mubr.bf16.gmra.mrb[0].mxu0 %v1260
        %v1392 = vpop.f32.mrb[0].mxu0
        %v1393 = vadd.f32 0.0, %v1392
        %v1394 = vpop.f32.mrb[0].mxu0
        %v1395 = vpop.f32.mrb[0].mxu0
        %v1396 = vadd.f32 0.0, %v1395
        %v1397 = vpop.f32.mrb[0].mxu0
        %1398 = vmatprep.mubr.bf16.mxu0 0
        %1399 = vmatmul.mubr.bf16.gmra.mrb[0].mxu0 %v1261
        %v1400 = vpop.f32.mrb[0].mxu0
        %v1401 = vadd.f32 0.0, %v1400
        %v1402 = vpop.f32.mrb[0].mxu0
        %v1403 = vpop.f32.mrb[0].mxu0
        %v1404 = vadd.f32 0.0, %v1403
        %v1405 = vpop.f32.mrb[0].mxu0
        %1406 = vdwg.mxu0
        %v1423 = vunpack.c.l.b16 %v1214
        %v1424 = vunpack.c.l.b16 %v1215
        %v1425 = vunpack.c.l.b16 %v1216
        %v1426 = vunpack.c.l.b16 %v1217
        %v1427 = vunpack.c.l.b16 %v1218
        %v1428 = vunpack.c.l.b16 %v1219
        %v1429 = vunpack.c.l.b16 %v1220
        %v1430 = vunpack.c.l.b16 %v1221
        %v1431 = vunpack.c.l.b16 %v1222
        %v1432 = vunpack.c.l.b16 %v1223
        %v1433 = vunpack.c.l.b16 %v1224
        %v1434 = vunpack.c.l.b16 %v1225
        %v1435 = vunpack.c.l.b16 %v1226
        %v1436 = vunpack.c.l.b16 %v1227
        %v1437 = vunpack.c.l.b16 %v1228
        %v1438 = vunpack.c.l.b16 %v1229
        %v1439 = vpack.c.b16 %v1424, %v1423
        %v1440 = vpack.c.b16 %v1426, %v1425
        %v1441 = vpack.c.b16 %v1428, %v1427
        %v1442 = vpack.c.b16 %v1430, %v1429
        %v1443 = vpack.c.b16 %v1432, %v1431
        %v1444 = vpack.c.b16 %v1434, %v1433
        %v1445 = vpack.c.b16 %v1436, %v1435
        %v1446 = vpack.c.b16 %v1438, %v1437
        %1455 = vmatprep.subr.bf16.mxu0 0
        %1456 = vmatpush1.bf16.msra.mxu0 %v1439
        %1457 = vmatprep.subr.bf16.mxu0 0
        %1458 = vmatpush1.bf16.msra.mxu0 %v1440
        %1459 = vmatprep.subr.bf16.mxu0 0
        %1460 = vmatpush1.bf16.msra.mxu0 %v1441
        %1461 = vmatprep.subr.bf16.mxu0 0
        %1462 = vmatpush1.bf16.msra.mxu0 %v1442
        %1463 = vmatprep.subr.bf16.mxu0 0
        %1464 = vmatpush1.bf16.msra.mxu0 %v1443
        %1465 = vmatprep.subr.bf16.mxu0 0
        %1466 = vmatpush1.bf16.msra.mxu0 %v1444
        %1467 = vmatprep.subr.bf16.mxu0 0
        %1468 = vmatpush1.bf16.msra.mxu0 %v1445
        %1469 = vmatprep.subr.bf16.mxu0 0
        %1470 = vmatpush1.bf16.msra.mxu0 %v1446
        %1471 = vmatprep.subr.bf16.mxu0 0
        %1472 = vmatpush1.bf16.msra.mxu0 0
        %1473 = vmatprep.subr.bf16.mxu0 0
        %1474 = vmatpush1.bf16.msra.mxu0 0
        %1475 = vmatprep.subr.bf16.mxu0 0
        %1476 = vmatpush1.bf16.msra.mxu0 0
        %1477 = vmatprep.subr.bf16.mxu0 0
        %1478 = vmatpush1.bf16.msra.mxu0 0
        %1479 = vmatprep.subr.bf16.mxu0 0
        %1480 = vmatpush1.bf16.msra.mxu0 0
        %1481 = vmatprep.subr.bf16.mxu0 0
        %1482 = vmatpush1.bf16.msra.mxu0 0
        %1483 = vmatprep.subr.bf16.mxu0 0
        %1484 = vmatpush1.bf16.msra.mxu0 0
        %1485 = vmatprep.subr.bf16.mxu0 0
        %1486 = vmatpush1.bf16.msra.mxu0 0
        %1487 = vmatprep.mubr.bf16.mxu0 0
        %1488 = vmatmul.mubr.bf16.gmra.mrb[0].mxu0 %v1230
        %v1489 = vpop.f32.mrb[0].mxu0
        %v1490 = vadd.f32 %v1345, %v1489
        %v1491 = vpop.f32.mrb[0].mxu0
        %v1492 = vpop.f32.mrb[0].mxu0
        %v1493 = vadd.f32 %v1348, %v1492
        %v1494 = vpop.f32.mrb[0].mxu0
        %1495 = vmatprep.mubr.bf16.mxu0 0
        %1496 = vmatmul.mubr.bf16.gmra.mrb[0].mxu0 %v1231
        %v1497 = vpop.f32.mrb[0].mxu0
        %v1498 = vadd.f32 %v1353, %v1497
        %v1499 = vpop.f32.mrb[0].mxu0
        %v1500 = vpop.f32.mrb[0].mxu0
        %v1501 = vadd.f32 %v1356, %v1500
        %v1502 = vpop.f32.mrb[0].mxu0
        %1503 = vmatprep.mubr.bf16.mxu0 0
        %1504 = vmatmul.mubr.bf16.gmra.mrb[0].mxu0 %v1232
        %v1505 = vpop.f32.mrb[0].mxu0
        %v1506 = vadd.f32 %v1361, %v1505
        %v1507 = vpop.f32.mrb[0].mxu0
        %v1508 = vpop.f32.mrb[0].mxu0
        %v1509 = vadd.f32 %v1364, %v1508
        %v1510 = vpop.f32.mrb[0].mxu0
        %1511 = vmatprep.mubr.bf16.mxu0 0
        %1512 = vmatmul.mubr.bf16.gmra.mrb[0].mxu0 %v1233
        %v1513 = vpop.f32.mrb[0].mxu0
        %v1514 = vadd.f32 %v1369, %v1513
        %v1515 = vpop.f32.mrb[0].mxu0
        %v1516 = vpop.f32.mrb[0].mxu0
        %v1517 = vadd.f32 %v1372, %v1516
        %v1518 = vpop.f32.mrb[0].mxu0
        %1519 = vmatprep.mubr.bf16.mxu0 0
        %1520 = vmatmul.mubr.bf16.gmra.mrb[0].mxu0 %v1234
        %v1521 = vpop.f32.mrb[0].mxu0
        %v1522 = vadd.f32 %v1377, %v1521
        %v1523 = vpop.f32.mrb[0].mxu0
        %v1524 = vpop.f32.mrb[0].mxu0
        %v1525 = vadd.f32 %v1380, %v1524
        %v1526 = vpop.f32.mrb[0].mxu0
        %1527 = vmatprep.mubr.bf16.mxu0 0
        %1528 = vmatmul.mubr.bf16.gmra.mrb[0].mxu0 %v1235
        %v1529 = vpop.f32.mrb[0].mxu0
        %v1530 = vadd.f32 %v1385, %v1529
        %v1531 = vpop.f32.mrb[0].mxu0
        %v1532 = vpop.f32.mrb[0].mxu0
        %v1533 = vadd.f32 %v1388, %v1532
        %v1534 = vpop.f32.mrb[0].mxu0
        %1535 = vmatprep.mubr.bf16.mxu0 0
        %1536 = vmatmul.mubr.bf16.gmra.mrb[0].mxu0 %v1236
        %v1537 = vpop.f32.mrb[0].mxu0
        %v1538 = vadd.f32 %v1393, %v1537
        %v1539 = vpop.f32.mrb[0].mxu0
        %v1540 = vpop.f32.mrb[0].mxu0
        %v1541 = vadd.f32 %v1396, %v1540
        %v1542 = vpop.f32.mrb[0].mxu0
        %1543 = vmatprep.mubr.bf16.mxu0 0
        %1544 = vmatmul.mubr.bf16.gmra.mrb[0].mxu0 %v1237
        %v1545 = vpop.f32.mrb[0].mxu0
        %v1546 = vadd.f32 %v1401, %v1545
        %v1547 = vpop.f32.mrb[0].mxu0
        %v1548 = vpop.f32.mrb[0].mxu0
        %v1549 = vadd.f32 %v1404, %v1548
        %v1550 = vpop.f32.mrb[0].mxu0
        %1551 = vdwg.mxu0
        %v1552 = vpack.c.bf16 %v1493, %v1490
        %v1553 = vpack.c.bf16 %v1501, %v1498
        %v1554 = vpack.c.bf16 %v1509, %v1506
        %v1555 = vpack.c.bf16 %v1517, %v1514
        %v1556 = vpack.c.bf16 %v1525, %v1522
        %v1557 = vpack.c.bf16 %v1533, %v1530
        %v1558 = vpack.c.bf16 %v1541, %v1538
        %v1559 = vpack.c.bf16 %v1549, %v1546
        %1560 = vmatprep.subr.bf16.mxu0 0
        %1561 = vmatpush1.bf16.msra.mxu0 %v1552
        %1562 = vmatprep.subr.bf16.mxu0 0
        %1563 = vmatpush1.bf16.msra.mxu0 0
        %1564 = vmatprep.subr.bf16.mxu0 0
        %1565 = vmatpush1.bf16.msra.mxu0 0
        %1566 = vmatprep.subr.bf16.mxu0 0
        %1567 = vmatpush1.bf16.msra.mxu0 0
        %1568 = vmatprep.subr.bf16.mxu0 0
        %1569 = vmatpush1.bf16.msra.mxu0 0
        %1570 = vmatprep.subr.bf16.mxu0 0
        %1571 = vmatpush1.bf16.msra.mxu0 0
        %1572 = vmatprep.subr.bf16.mxu0 0
        %1573 = vmatpush1.bf16.msra.mxu0 0
        %1574 = vmatprep.subr.bf16.mxu0 0
        %1575 = vmatpush1.bf16.msra.mxu0 0
        %1576 = vmatprep.subr.bf16.mxu0 0
        %1577 = vmatpush1.bf16.msra.mxu0 0
        %1578 = vmatprep.subr.bf16.mxu0 0
        %1579 = vmatpush1.bf16.msra.mxu0 0
        %1580 = vmatprep.subr.bf16.mxu0 0
        %1581 = vmatpush1.bf16.msra.mxu0 0
        %1582 = vmatprep.subr.bf16.mxu0 0
        %1583 = vmatpush1.bf16.msra.mxu0 0
        %1584 = vmatprep.subr.bf16.mxu0 0
        %1585 = vmatpush1.bf16.msra.mxu0 0
        %1586 = vmatprep.subr.bf16.mxu0 0
        %1587 = vmatpush1.bf16.msra.mxu0 0
        %1588 = vmatprep.subr.bf16.mxu0 0
        %1589 = vmatpush1.bf16.msra.mxu0 0
        %1590 = vmatprep.subr.bf16.mxu0 0
        %1591 = vmatpush1.bf16.msra.mxu0 0
        %1592 = vmatprep.mubr.bf16.mxu0 0
        %1593 = vmatmul.mubr.bf16.gmra.mrb[0].mxu0 %v529
        %v1594 = vpop.f32.mrb[0].mxu0
        %v1595 = vadd.f32 0.0, %v1594
        %v1596 = vpop.f32.mrb[0].mxu0
        %v1597 = vpop.f32.mrb[0].mxu0
        %v1598 = vadd.f32 0.0, %v1597
        %v1599 = vpop.f32.mrb[0].mxu0
        %1600 = vdwg.mxu0
        %1601 = vmatprep.subr.bf16.mxu0 0
        %1602 = vmatpush1.bf16.msra.mxu0 %v1553
        %1603 = vmatprep.subr.bf16.mxu0 0
        %1604 = vmatpush1.bf16.msra.mxu0 0
        %1605 = vmatprep.subr.bf16.mxu0 0
        %1606 = vmatpush1.bf16.msra.mxu0 0
        %1607 = vmatprep.subr.bf16.mxu0 0
        %1608 = vmatpush1.bf16.msra.mxu0 0
        %1609 = vmatprep.subr.bf16.mxu0 0
        %1610 = vmatpush1.bf16.msra.mxu0 0
        %1611 = vmatprep.subr.bf16.mxu0 0
        %1612 = vmatpush1.bf16.msra.mxu0 0
        %1613 = vmatprep.subr.bf16.mxu0 0
        %1614 = vmatpush1.bf16.msra.mxu0 0
        %1615 = vmatprep.subr.bf16.mxu0 0
        %1616 = vmatpush1.bf16.msra.mxu0 0
        %1617 = vmatprep.subr.bf16.mxu0 0
        %1618 = vmatpush1.bf16.msra.mxu0 0
        %1619 = vmatprep.subr.bf16.mxu0 0
        %1620 = vmatpush1.bf16.msra.mxu0 0
        %1621 = vmatprep.subr.bf16.mxu0 0
        %1622 = vmatpush1.bf16.msra.mxu0 0
        %1623 = vmatprep.subr.bf16.mxu0 0
        %1624 = vmatpush1.bf16.msra.mxu0 0
        %1625 = vmatprep.subr.bf16.mxu0 0
        %1626 = vmatpush1.bf16.msra.mxu0 0
        %1627 = vmatprep.subr.bf16.mxu0 0
        %1628 = vmatpush1.bf16.msra.mxu0 0
        %1629 = vmatprep.subr.bf16.mxu0 0
        %1630 = vmatpush1.bf16.msra.mxu0 0
        %1631 = vmatprep.subr.bf16.mxu0 0
        %1632 = vmatpush1.bf16.msra.mxu0 0
        %1633 = vmatprep.mubr.bf16.mxu0 0
        %1634 = vmatmul.mubr.bf16.gmra.mrb[0].mxu0 %v578
        %v1635 = vpop.f32.mrb[0].mxu0
        %v1636 = vadd.f32 0.0, %v1635
        %v1637 = vpop.f32.mrb[0].mxu0
        %v1638 = vpop.f32.mrb[0].mxu0
        %v1639 = vadd.f32 0.0, %v1638
        %v1640 = vpop.f32.mrb[0].mxu0
        %1641 = vdwg.mxu0
        %1642 = vmatprep.subr.bf16.mxu0 0
        %1643 = vmatpush1.bf16.msra.mxu0 %v1554
        %1644 = vmatprep.subr.bf16.mxu0 0
        %1645 = vmatpush1.bf16.msra.mxu0 0
        %1646 = vmatprep.subr.bf16.mxu0 0
        %1647 = vmatpush1.bf16.msra.mxu0 0
        %1648 = vmatprep.subr.bf16.mxu0 0
        %1649 = vmatpush1.bf16.msra.mxu0 0
        %1650 = vmatprep.subr.bf16.mxu0 0
        %1651 = vmatpush1.bf16.msra.mxu0 0
        %1652 = vmatprep.subr.bf16.mxu0 0
        %1653 = vmatpush1.bf16.msra.mxu0 0
        %1654 = vmatprep.subr.bf16.mxu0 0
        %1655 = vmatpush1.bf16.msra.mxu0 0
        %1656 = vmatprep.subr.bf16.mxu0 0
        %1657 = vmatpush1.bf16.msra.mxu0 0
        %1658 = vmatprep.subr.bf16.mxu0 0
        %1659 = vmatpush1.bf16.msra.mxu0 0
        %1660 = vmatprep.subr.bf16.mxu0 0
        %1661 = vmatpush1.bf16.msra.mxu0 0
        %1662 = vmatprep.subr.bf16.mxu0 0
        %1663 = vmatpush1.bf16.msra.mxu0 0
        %1664 = vmatprep.subr.bf16.mxu0 0
        %1665 = vmatpush1.bf16.msra.mxu0 0
        %1666 = vmatprep.subr.bf16.mxu0 0
        %1667 = vmatpush1.bf16.msra.mxu0 0
        %1668 = vmatprep.subr.bf16.mxu0 0
        %1669 = vmatpush1.bf16.msra.mxu0 0
        %1670 = vmatprep.subr.bf16.mxu0 0
        %1671 = vmatpush1.bf16.msra.mxu0 0
        %1672 = vmatprep.subr.bf16.mxu0 0
        %1673 = vmatpush1.bf16.msra.mxu0 0
        %1674 = vmatprep.mubr.bf16.mxu0 0
        %1675 = vmatmul.mubr.bf16.gmra.mrb[0].mxu0 %v627
        %v1676 = vpop.f32.mrb[0].mxu0
        %v1677 = vadd.f32 0.0, %v1676
        %v1678 = vpop.f32.mrb[0].mxu0
        %v1679 = vpop.f32.mrb[0].mxu0
        %v1680 = vadd.f32 0.0, %v1679
        %v1681 = vpop.f32.mrb[0].mxu0
        %1682 = vdwg.mxu0
        %1683 = vmatprep.subr.bf16.mxu0 0
        %1684 = vmatpush1.bf16.msra.mxu0 %v1555
        %1685 = vmatprep.subr.bf16.mxu0 0
        %1686 = vmatpush1.bf16.msra.mxu0 0
        %1687 = vmatprep.subr.bf16.mxu0 0
        %1688 = vmatpush1.bf16.msra.mxu0 0
        %1689 = vmatprep.subr.bf16.mxu0 0
        %1690 = vmatpush1.bf16.msra.mxu0 0
        %1691 = vmatprep.subr.bf16.mxu0 0
        %1692 = vmatpush1.bf16.msra.mxu0 0
        %1693 = vmatprep.subr.bf16.mxu0 0
        %1694 = vmatpush1.bf16.msra.mxu0 0
        %1695 = vmatprep.subr.bf16.mxu0 0
        %1696 = vmatpush1.bf16.msra.mxu0 0
        %1697 = vmatprep.subr.bf16.mxu0 0
        %1698 = vmatpush1.bf16.msra.mxu0 0
        %1699 = vmatprep.subr.bf16.mxu0 0
        %1700 = vmatpush1.bf16.msra.mxu0 0
        %1701 = vmatprep.subr.bf16.mxu0 0
        %1702 = vmatpush1.bf16.msra.mxu0 0
        %1703 = vmatprep.subr.bf16.mxu0 0
        %1704 = vmatpush1.bf16.msra.mxu0 0
        %1705 = vmatprep.subr.bf16.mxu0 0
        %1706 = vmatpush1.bf16.msra.mxu0 0
        %1707 = vmatprep.subr.bf16.mxu0 0
        %1708 = vmatpush1.bf16.msra.mxu0 0
        %1709 = vmatprep.subr.bf16.mxu0 0
        %1710 = vmatpush1.bf16.msra.mxu0 0
        %1711 = vmatprep.subr.bf16.mxu0 0
        %1712 = vmatpush1.bf16.msra.mxu0 0
        %1713 = vmatprep.subr.bf16.mxu0 0
        %1714 = vmatpush1.bf16.msra.mxu0 0
        %1715 = vmatprep.mubr.bf16.mxu0 0
        %1716 = vmatmul.mubr.bf16.gmra.mrb[0].mxu0 %v676
        %v1717 = vpop.f32.mrb[0].mxu0
        %v1718 = vadd.f32 0.0, %v1717
        %v1719 = vpop.f32.mrb[0].mxu0
        %v1720 = vpop.f32.mrb[0].mxu0
        %v1721 = vadd.f32 0.0, %v1720
        %v1722 = vpop.f32.mrb[0].mxu0
        %1723 = vdwg.mxu0
        %1724 = vmatprep.subr.bf16.mxu0 0
        %1725 = vmatpush1.bf16.msra.mxu0 %v1556
        %1726 = vmatprep.subr.bf16.mxu0 0
        %1727 = vmatpush1.bf16.msra.mxu0 0
        %1728 = vmatprep.subr.bf16.mxu0 0
        %1729 = vmatpush1.bf16.msra.mxu0 0
        %1730 = vmatprep.subr.bf16.mxu0 0
        %1731 = vmatpush1.bf16.msra.mxu0 0
        %1732 = vmatprep.subr.bf16.mxu0 0
        %1733 = vmatpush1.bf16.msra.mxu0 0
        %1734 = vmatprep.subr.bf16.mxu0 0
        %1735 = vmatpush1.bf16.msra.mxu0 0
        %1736 = vmatprep.subr.bf16.mxu0 0
        %1737 = vmatpush1.bf16.msra.mxu0 0
        %1738 = vmatprep.subr.bf16.mxu0 0
        %1739 = vmatpush1.bf16.msra.mxu0 0
        %1740 = vmatprep.subr.bf16.mxu0 0
        %1741 = vmatpush1.bf16.msra.mxu0 0
        %1742 = vmatprep.subr.bf16.mxu0 0
        %1743 = vmatpush1.bf16.msra.mxu0 0
        %1744 = vmatprep.subr.bf16.mxu0 0
        %1745 = vmatpush1.bf16.msra.mxu0 0
        %1746 = vmatprep.subr.bf16.mxu0 0
        %1747 = vmatpush1.bf16.msra.mxu0 0
        %1748 = vmatprep.subr.bf16.mxu0 0
        %1749 = vmatpush1.bf16.msra.mxu0 0
        %1750 = vmatprep.subr.bf16.mxu0 0
        %1751 = vmatpush1.bf16.msra.mxu0 0
        %1752 = vmatprep.subr.bf16.mxu0 0
        %1753 = vmatpush1.bf16.msra.mxu0 0
        %1754 = vmatprep.subr.bf16.mxu0 0
        %1755 = vmatpush1.bf16.msra.mxu0 0
        %1756 = vmatprep.mubr.bf16.mxu0 0
        %1757 = vmatmul.mubr.bf16.gmra.mrb[0].mxu0 %v725
        %v1758 = vpop.f32.mrb[0].mxu0
        %v1759 = vadd.f32 0.0, %v1758
        %v1760 = vpop.f32.mrb[0].mxu0
        %v1761 = vpop.f32.mrb[0].mxu0
        %v1762 = vadd.f32 0.0, %v1761
        %v1763 = vpop.f32.mrb[0].mxu0
        %1764 = vdwg.mxu0
        %1765 = vmatprep.subr.bf16.mxu0 0
        %1766 = vmatpush1.bf16.msra.mxu0 %v1557
        %1767 = vmatprep.subr.bf16.mxu0 0
        %1768 = vmatpush1.bf16.msra.mxu0 0
        %1769 = vmatprep.subr.bf16.mxu0 0
        %1770 = vmatpush1.bf16.msra.mxu0 0
        %1771 = vmatprep.subr.bf16.mxu0 0
        %1772 = vmatpush1.bf16.msra.mxu0 0
        %1773 = vmatprep.subr.bf16.mxu0 0
        %1774 = vmatpush1.bf16.msra.mxu0 0
        %1775 = vmatprep.subr.bf16.mxu0 0
        %1776 = vmatpush1.bf16.msra.mxu0 0
        %1777 = vmatprep.subr.bf16.mxu0 0
        %1778 = vmatpush1.bf16.msra.mxu0 0
        %1779 = vmatprep.subr.bf16.mxu0 0
        %1780 = vmatpush1.bf16.msra.mxu0 0
        %1781 = vmatprep.subr.bf16.mxu0 0
        %1782 = vmatpush1.bf16.msra.mxu0 0
        %1783 = vmatprep.subr.bf16.mxu0 0
        %1784 = vmatpush1.bf16.msra.mxu0 0
        %1785 = vmatprep.subr.bf16.mxu0 0
        %1786 = vmatpush1.bf16.msra.mxu0 0
        %1787 = vmatprep.subr.bf16.mxu0 0
        %1788 = vmatpush1.bf16.msra.mxu0 0
        %1789 = vmatprep.subr.bf16.mxu0 0
        %1790 = vmatpush1.bf16.msra.mxu0 0
        %1791 = vmatprep.subr.bf16.mxu0 0
        %1792 = vmatpush1.bf16.msra.mxu0 0
        %1793 = vmatprep.subr.bf16.mxu0 0
        %1794 = vmatpush1.bf16.msra.mxu0 0
        %1795 = vmatprep.subr.bf16.mxu0 0
        %1796 = vmatpush1.bf16.msra.mxu0 0
        %1797 = vmatprep.mubr.bf16.mxu0 0
        %1798 = vmatmul.mubr.bf16.gmra.mrb[0].mxu0 %v774
        %v1799 = vpop.f32.mrb[0].mxu0
        %v1800 = vadd.f32 0.0, %v1799
        %v1801 = vpop.f32.mrb[0].mxu0
        %v1802 = vpop.f32.mrb[0].mxu0
        %v1803 = vadd.f32 0.0, %v1802
        %v1804 = vpop.f32.mrb[0].mxu0
        %1805 = vdwg.mxu0
        %1806 = vmatprep.subr.bf16.mxu0 0
        %1807 = vmatpush1.bf16.msra.mxu0 %v1558
        %1808 = vmatprep.subr.bf16.mxu0 0
        %1809 = vmatpush1.bf16.msra.mxu0 0
        %1810 = vmatprep.subr.bf16.mxu0 0
        %1811 = vmatpush1.bf16.msra.mxu0 0
        %1812 = vmatprep.subr.bf16.mxu0 0
        %1813 = vmatpush1.bf16.msra.mxu0 0
        %1814 = vmatprep.subr.bf16.mxu0 0
        %1815 = vmatpush1.bf16.msra.mxu0 0
        %1816 = vmatprep.subr.bf16.mxu0 0
        %1817 = vmatpush1.bf16.msra.mxu0 0
        %1818 = vmatprep.subr.bf16.mxu0 0
        %1819 = vmatpush1.bf16.msra.mxu0 0
        %1820 = vmatprep.subr.bf16.mxu0 0
        %1821 = vmatpush1.bf16.msra.mxu0 0
        %1822 = vmatprep.subr.bf16.mxu0 0
        %1823 = vmatpush1.bf16.msra.mxu0 0
        %1824 = vmatprep.subr.bf16.mxu0 0
        %1825 = vmatpush1.bf16.msra.mxu0 0
        %1826 = vmatprep.subr.bf16.mxu0 0
        %1827 = vmatpush1.bf16.msra.mxu0 0
        %1828 = vmatprep.subr.bf16.mxu0 0
        %1829 = vmatpush1.bf16.msra.mxu0 0
        %1830 = vmatprep.subr.bf16.mxu0 0
        %1831 = vmatpush1.bf16.msra.mxu0 0
        %1832 = vmatprep.subr.bf16.mxu0 0
        %1833 = vmatpush1.bf16.msra.mxu0 0
        %1834 = vmatprep.subr.bf16.mxu0 0
        %1835 = vmatpush1.bf16.msra.mxu0 0
        %1836 = vmatprep.subr.bf16.mxu0 0
        %1837 = vmatpush1.bf16.msra.mxu0 0
        %1838 = vmatprep.mubr.bf16.mxu0 0
        %1839 = vmatmul.mubr.bf16.gmra.mrb[0].mxu0 %v823
        %v1840 = vpop.f32.mrb[0].mxu0
        %v1841 = vadd.f32 0.0, %v1840
        %v1842 = vpop.f32.mrb[0].mxu0
        %v1843 = vpop.f32.mrb[0].mxu0
        %v1844 = vadd.f32 0.0, %v1843
        %v1845 = vpop.f32.mrb[0].mxu0
        %1846 = vdwg.mxu0
        %1847 = vmatprep.subr.bf16.mxu0 0
        %1848 = vmatpush1.bf16.msra.mxu0 %v1559
        %1849 = vmatprep.subr.bf16.mxu0 0
        %1850 = vmatpush1.bf16.msra.mxu0 0
        %1851 = vmatprep.subr.bf16.mxu0 0
        %1852 = vmatpush1.bf16.msra.mxu0 0
        %1853 = vmatprep.subr.bf16.mxu0 0
        %1854 = vmatpush1.bf16.msra.mxu0 0
        %1855 = vmatprep.subr.bf16.mxu0 0
        %1856 = vmatpush1.bf16.msra.mxu0 0
        %1857 = vmatprep.subr.bf16.mxu0 0
        %1858 = vmatpush1.bf16.msra.mxu0 0
        %1859 = vmatprep.subr.bf16.mxu0 0
        %1860 = vmatpush1.bf16.msra.mxu0 0
        %1861 = vmatprep.subr.bf16.mxu0 0
        %1862 = vmatpush1.bf16.msra.mxu0 0
        %1863 = vmatprep.subr.bf16.mxu0 0
        %1864 = vmatpush1.bf16.msra.mxu0 0
        %1865 = vmatprep.subr.bf16.mxu0 0
        %1866 = vmatpush1.bf16.msra.mxu0 0
        %1867 = vmatprep.subr.bf16.mxu0 0
        %1868 = vmatpush1.bf16.msra.mxu0 0
        %1869 = vmatprep.subr.bf16.mxu0 0
        %1870 = vmatpush1.bf16.msra.mxu0 0
        %1871 = vmatprep.subr.bf16.mxu0 0
        %1872 = vmatpush1.bf16.msra.mxu0 0
        %1873 = vmatprep.subr.bf16.mxu0 0
        %1874 = vmatpush1.bf16.msra.mxu0 0
        %1875 = vmatprep.subr.bf16.mxu0 0
        %1876 = vmatpush1.bf16.msra.mxu0 0
        %1877 = vmatprep.subr.bf16.mxu0 0
        %1878 = vmatpush1.bf16.msra.mxu0 0
        %1879 = vmatprep.mubr.bf16.mxu0 0
        %1880 = vmatmul.mubr.bf16.gmra.mrb[0].mxu0 %v872
        %v1881 = vpop.f32.mrb[0].mxu0
        %v1882 = vadd.f32 0.0, %v1881
        %v1883 = vpop.f32.mrb[0].mxu0
        %v1884 = vpop.f32.mrb[0].mxu0
        %v1885 = vadd.f32 0.0, %v1884
        %v1886 = vpop.f32.mrb[0].mxu0
        %1887 = vdwg.mxu0
        %v1888 = vmax.f32 %v1595, 0.0
        %v1889 = vmax.f32 %v1598, 0.0
        %v1890 = vmax.f32 %v1636, 0.0
        %v1891 = vmax.f32 %v1639, 0.0
        %v1892 = vmax.f32 %v1677, 0.0
        %v1893 = vmax.f32 %v1680, 0.0
        %v1894 = vmax.f32 %v1718, 0.0
        %v1895 = vmax.f32 %v1721, 0.0
        %v1896 = vmax.f32 %v1759, 0.0
        %v1897 = vmax.f32 %v1762, 0.0
        %v1898 = vmax.f32 %v1800, 0.0
        %v1899 = vmax.f32 %v1803, 0.0
        %v1900 = vmax.f32 %v1841, 0.0
        %v1901 = vmax.f32 %v1844, 0.0
        %v1902 = vmax.f32 %v1882, 0.0
        %v1903 = vmax.f32 %v1885, 0.0
        %v1904 = vld [vmem:[%s5] sm:$0xf]
        %v1905 = vld [vmem:[%s5 + $0x4] sm:$0xf]
        %v1906 = vld [vmem:[%s5 + $0x8] sm:$0xf]
        %v1907 = vld [vmem:[%s5 + $0xc] sm:$0xf]
        %v1908 = vld [vmem:[%s5 + $0x10] sm:$0xf]
        %v1909 = vld [vmem:[%s5 + $0x14] sm:$0xf]
        %v1910 = vld [vmem:[%s5 + $0x18] sm:$0xf]
        %v1911 = vld [vmem:[%s5 + $0x1c] sm:$0xf]
        %v1912 = vld [vmem:[%s5 + $0x20] sm:$0xf]
        %v1913 = vld [vmem:[%s5 + $0x24] sm:$0xf]
        %v1914 = vld [vmem:[%s5 + $0x28] sm:$0xf]
        %v1915 = vld [vmem:[%s5 + $0x2c] sm:$0xf]
        %v1916 = vld [vmem:[%s5 + $0x30] sm:$0xf]
        %v1917 = vld [vmem:[%s5 + $0x34] sm:$0xf]
        %v1918 = vld [vmem:[%s5 + $0x38] sm:$0xf]
        %v1919 = vld [vmem:[%s5 + $0x3c] sm:$0xf]
        %v1920 = vpack.c.bf16 %v1889, %v1888
        %v1921 = vpack.c.bf16 %v1891, %v1890
        %v1922 = vpack.c.bf16 %v1893, %v1892
        %v1923 = vpack.c.bf16 %v1895, %v1894
        %v1924 = vpack.c.bf16 %v1897, %v1896
        %v1925 = vpack.c.bf16 %v1899, %v1898
        %v1926 = vpack.c.bf16 %v1901, %v1900
        %v1927 = vpack.c.bf16 %v1903, %v1902
        %v1944 = vunpack.c.l.b16 %v1904
        %v1945 = vunpack.c.l.b16 %v1905
        %v1946 = vunpack.c.l.b16 %v1906
        %v1947 = vunpack.c.l.b16 %v1907
        %v1948 = vunpack.c.l.b16 %v1908
        %v1949 = vunpack.c.l.b16 %v1909
        %v1950 = vunpack.c.l.b16 %v1910
        %v1951 = vunpack.c.l.b16 %v1911
        %v1952 = vunpack.c.l.b16 %v1912
        %v1953 = vunpack.c.l.b16 %v1913
        %v1954 = vunpack.c.l.b16 %v1914
        %v1955 = vunpack.c.l.b16 %v1915
        %v1956 = vunpack.c.l.b16 %v1916
        %v1957 = vunpack.c.l.b16 %v1917
        %v1958 = vunpack.c.l.b16 %v1918
        %v1959 = vunpack.c.l.b16 %v1919
        %v1960 = vpack.c.b16 %v1945, %v1944
        %v1961 = vpack.c.b16 %v1947, %v1946
        %v1962 = vpack.c.b16 %v1949, %v1948
        %v1963 = vpack.c.b16 %v1951, %v1950
        %v1964 = vpack.c.b16 %v1953, %v1952
        %v1965 = vpack.c.b16 %v1955, %v1954
        %v1966 = vpack.c.b16 %v1957, %v1956
        %v1967 = vpack.c.b16 %v1959, %v1958
        %1976 = vmatprep.subr.bf16.mxu0 0
        %1977 = vmatpush1.bf16.msra.mxu0 %v1960
        %1978 = vmatprep.subr.bf16.mxu0 0
        %1979 = vmatpush1.bf16.msra.mxu0 %v1961
        %1980 = vmatprep.subr.bf16.mxu0 0
        %1981 = vmatpush1.bf16.msra.mxu0 %v1962
        %1982 = vmatprep.subr.bf16.mxu0 0
        %1983 = vmatpush1.bf16.msra.mxu0 %v1963
        %1984 = vmatprep.subr.bf16.mxu0 0
        %1985 = vmatpush1.bf16.msra.mxu0 %v1964
        %1986 = vmatprep.subr.bf16.mxu0 0
        %1987 = vmatpush1.bf16.msra.mxu0 %v1965
        %1988 = vmatprep.subr.bf16.mxu0 0
        %1989 = vmatpush1.bf16.msra.mxu0 %v1966
        %1990 = vmatprep.subr.bf16.mxu0 0
        %1991 = vmatpush1.bf16.msra.mxu0 %v1967
        %1992 = vmatprep.subr.bf16.mxu0 0
        %1993 = vmatpush1.bf16.msra.mxu0 0
        %1994 = vmatprep.subr.bf16.mxu0 0
        %1995 = vmatpush1.bf16.msra.mxu0 0
        %1996 = vmatprep.subr.bf16.mxu0 0
        %1997 = vmatpush1.bf16.msra.mxu0 0
        %1998 = vmatprep.subr.bf16.mxu0 0
        %1999 = vmatpush1.bf16.msra.mxu0 0
        %2000 = vmatprep.subr.bf16.mxu0 0
        %2001 = vmatpush1.bf16.msra.mxu0 0
        %2002 = vmatprep.subr.bf16.mxu0 0
        %2003 = vmatpush1.bf16.msra.mxu0 0
        %2004 = vmatprep.subr.bf16.mxu0 0
        %2005 = vmatpush1.bf16.msra.mxu0 0
        %2006 = vmatprep.subr.bf16.mxu0 0
        %2007 = vmatpush1.bf16.msra.mxu0 0
        %2008 = vmatprep.mubr.bf16.mxu0 0
        %2009 = vmatmul.mubr.bf16.gmra.mrb[0].mxu0 %v1920
        %v2010 = vpop.f32.mrb[0].mxu0
        %v2011 = vadd.f32 0.0, %v2010
        %v2012 = vpop.f32.mrb[0].mxu0
        %v2013 = vpop.f32.mrb[0].mxu0
        %v2014 = vadd.f32 0.0, %v2013
        %v2015 = vpop.f32.mrb[0].mxu0
        %2016 = vmatprep.mubr.bf16.mxu0 0
        %2017 = vmatmul.mubr.bf16.gmra.mrb[0].mxu0 %v1921
        %v2018 = vpop.f32.mrb[0].mxu0
        %v2019 = vadd.f32 0.0, %v2018
        %v2020 = vpop.f32.mrb[0].mxu0
        %v2021 = vpop.f32.mrb[0].mxu0
        %v2022 = vadd.f32 0.0, %v2021
        %v2023 = vpop.f32.mrb[0].mxu0
        %2024 = vmatprep.mubr.bf16.mxu0 0
        %2025 = vmatmul.mubr.bf16.gmra.mrb[0].mxu0 %v1922
        %v2026 = vpop.f32.mrb[0].mxu0
        %v2027 = vadd.f32 0.0, %v2026
        %v2028 = vpop.f32.mrb[0].mxu0
        %v2029 = vpop.f32.mrb[0].mxu0
        %v2030 = vadd.f32 0.0, %v2029
        %v2031 = vpop.f32.mrb[0].mxu0
        %2032 = vmatprep.mubr.bf16.mxu0 0
        %2033 = vmatmul.mubr.bf16.gmra.mrb[0].mxu0 %v1923
        %v2034 = vpop.f32.mrb[0].mxu0
        %v2035 = vadd.f32 0.0, %v2034
        %v2036 = vpop.f32.mrb[0].mxu0
        %v2037 = vpop.f32.mrb[0].mxu0
        %v2038 = vadd.f32 0.0, %v2037
        %v2039 = vpop.f32.mrb[0].mxu0
        %2040 = vmatprep.mubr.bf16.mxu0 0
        %2041 = vmatmul.mubr.bf16.gmra.mrb[0].mxu0 %v1924
        %v2042 = vpop.f32.mrb[0].mxu0
        %v2043 = vadd.f32 0.0, %v2042
        %v2044 = vpop.f32.mrb[0].mxu0
        %v2045 = vpop.f32.mrb[0].mxu0
        %v2046 = vadd.f32 0.0, %v2045
        %v2047 = vpop.f32.mrb[0].mxu0
        %2048 = vmatprep.mubr.bf16.mxu0 0
        %2049 = vmatmul.mubr.bf16.gmra.mrb[0].mxu0 %v1925
        %v2050 = vpop.f32.mrb[0].mxu0
        %v2051 = vadd.f32 0.0, %v2050
        %v2052 = vpop.f32.mrb[0].mxu0
        %v2053 = vpop.f32.mrb[0].mxu0
        %v2054 = vadd.f32 0.0, %v2053
        %v2055 = vpop.f32.mrb[0].mxu0
        %2056 = vmatprep.mubr.bf16.mxu0 0
        %2057 = vmatmul.mubr.bf16.gmra.mrb[0].mxu0 %v1926
        %v2058 = vpop.f32.mrb[0].mxu0
        %v2059 = vadd.f32 0.0, %v2058
        %v2060 = vpop.f32.mrb[0].mxu0
        %v2061 = vpop.f32.mrb[0].mxu0
        %v2062 = vadd.f32 0.0, %v2061
        %v2063 = vpop.f32.mrb[0].mxu0
        %2064 = vmatprep.mubr.bf16.mxu0 0
        %2065 = vmatmul.mubr.bf16.gmra.mrb[0].mxu0 %v1927
        %v2066 = vpop.f32.mrb[0].mxu0
        %v2067 = vadd.f32 0.0, %v2066
        %v2068 = vpop.f32.mrb[0].mxu0
        %v2069 = vpop.f32.mrb[0].mxu0
        %v2070 = vadd.f32 0.0, %v2069
        %v2071 = vpop.f32.mrb[0].mxu0
        %2072 = vdwg.mxu0
        %v2073 = vpack.c.bf16 %v2014, %v2011
        %v2074 = vpack.c.bf16 %v2022, %v2019
        %v2075 = vpack.c.bf16 %v2030, %v2027
        %v2076 = vpack.c.bf16 %v2038, %v2035
        %v2077 = vpack.c.bf16 %v2046, %v2043
        %v2078 = vpack.c.bf16 %v2054, %v2051
        %v2079 = vpack.c.bf16 %v2062, %v2059
        %v2080 = vpack.c.bf16 %v2070, %v2067
        %2081 = vmatprep.subr.bf16.mxu0 0
        %2082 = vmatpush1.bf16.msra.mxu0 %v2073
        %2083 = vmatprep.subr.bf16.mxu0 0
        %2084 = vmatpush1.bf16.msra.mxu0 0
        %2085 = vmatprep.subr.bf16.mxu0 0
        %2086 = vmatpush1.bf16.msra.mxu0 0
        %2087 = vmatprep.subr.bf16.mxu0 0
        %2088 = vmatpush1.bf16.msra.mxu0 0
        %2089 = vmatprep.subr.bf16.mxu0 0
        %2090 = vmatpush1.bf16.msra.mxu0 0
        %2091 = vmatprep.subr.bf16.mxu0 0
        %2092 = vmatpush1.bf16.msra.mxu0 0
        %2093 = vmatprep.subr.bf16.mxu0 0
        %2094 = vmatpush1.bf16.msra.mxu0 0
        %2095 = vmatprep.subr.bf16.mxu0 0
        %2096 = vmatpush1.bf16.msra.mxu0 0
        %2097 = vmatprep.subr.bf16.mxu0 0
        %2098 = vmatpush1.bf16.msra.mxu0 0
        %2099 = vmatprep.subr.bf16.mxu0 0
        %2100 = vmatpush1.bf16.msra.mxu0 0
        %2101 = vmatprep.subr.bf16.mxu0 0
        %2102 = vmatpush1.bf16.msra.mxu0 0
        %2103 = vmatprep.subr.bf16.mxu0 0
        %2104 = vmatpush1.bf16.msra.mxu0 0
        %2105 = vmatprep.subr.bf16.mxu0 0
        %2106 = vmatpush1.bf16.msra.mxu0 0
        %2107 = vmatprep.subr.bf16.mxu0 0
        %2108 = vmatpush1.bf16.msra.mxu0 0
        %2109 = vmatprep.subr.bf16.mxu0 0
        %2110 = vmatpush1.bf16.msra.mxu0 0
        %2111 = vmatprep.subr.bf16.mxu0 0
        %2112 = vmatpush1.bf16.msra.mxu0 0
        %2113 = vmatprep.mubr.bf16.mxu0 0
        %2114 = vmatmul.mubr.bf16.gmra.mrb[0].mxu0 %v529
        %v2115 = vpop.f32.mrb[0].mxu0
        %v2116 = vadd.f32 0.0, %v2115
        %v2117 = vpop.f32.mrb[0].mxu0
        %v2118 = vpop.f32.mrb[0].mxu0
        %v2119 = vadd.f32 0.0, %v2118
        %v2120 = vpop.f32.mrb[0].mxu0
        %2121 = vdwg.mxu0
        %2122 = vmatprep.subr.bf16.mxu0 0
        %2123 = vmatpush1.bf16.msra.mxu0 %v2074
        %2124 = vmatprep.subr.bf16.mxu0 0
        %2125 = vmatpush1.bf16.msra.mxu0 0
        %2126 = vmatprep.subr.bf16.mxu0 0
        %2127 = vmatpush1.bf16.msra.mxu0 0
        %2128 = vmatprep.subr.bf16.mxu0 0
        %2129 = vmatpush1.bf16.msra.mxu0 0
        %2130 = vmatprep.subr.bf16.mxu0 0
        %2131 = vmatpush1.bf16.msra.mxu0 0
        %2132 = vmatprep.subr.bf16.mxu0 0
        %2133 = vmatpush1.bf16.msra.mxu0 0
        %2134 = vmatprep.subr.bf16.mxu0 0
        %2135 = vmatpush1.bf16.msra.mxu0 0
        %2136 = vmatprep.subr.bf16.mxu0 0
        %2137 = vmatpush1.bf16.msra.mxu0 0
        %2138 = vmatprep.subr.bf16.mxu0 0
        %2139 = vmatpush1.bf16.msra.mxu0 0
        %2140 = vmatprep.subr.bf16.mxu0 0
        %2141 = vmatpush1.bf16.msra.mxu0 0
        %2142 = vmatprep.subr.bf16.mxu0 0
        %2143 = vmatpush1.bf16.msra.mxu0 0
        %2144 = vmatprep.subr.bf16.mxu0 0
        %2145 = vmatpush1.bf16.msra.mxu0 0
        %2146 = vmatprep.subr.bf16.mxu0 0
        %2147 = vmatpush1.bf16.msra.mxu0 0
        %2148 = vmatprep.subr.bf16.mxu0 0
        %2149 = vmatpush1.bf16.msra.mxu0 0
        %2150 = vmatprep.subr.bf16.mxu0 0
        %2151 = vmatpush1.bf16.msra.mxu0 0
        %2152 = vmatprep.subr.bf16.mxu0 0
        %2153 = vmatpush1.bf16.msra.mxu0 0
        %2154 = vmatprep.mubr.bf16.mxu0 0
        %2155 = vmatmul.mubr.bf16.gmra.mrb[0].mxu0 %v578
        %v2156 = vpop.f32.mrb[0].mxu0
        %v2157 = vadd.f32 0.0, %v2156
        %v2158 = vpop.f32.mrb[0].mxu0
        %v2159 = vpop.f32.mrb[0].mxu0
        %v2160 = vadd.f32 0.0, %v2159
        %v2161 = vpop.f32.mrb[0].mxu0
        %2162 = vdwg.mxu0
        %2163 = vmatprep.subr.bf16.mxu0 0
        %2164 = vmatpush1.bf16.msra.mxu0 %v2075
        %2165 = vmatprep.subr.bf16.mxu0 0
        %2166 = vmatpush1.bf16.msra.mxu0 0
        %2167 = vmatprep.subr.bf16.mxu0 0
        %2168 = vmatpush1.bf16.msra.mxu0 0
        %2169 = vmatprep.subr.bf16.mxu0 0
        %2170 = vmatpush1.bf16.msra.mxu0 0
        %2171 = vmatprep.subr.bf16.mxu0 0
        %2172 = vmatpush1.bf16.msra.mxu0 0
        %2173 = vmatprep.subr.bf16.mxu0 0
        %2174 = vmatpush1.bf16.msra.mxu0 0
        %2175 = vmatprep.subr.bf16.mxu0 0
        %2176 = vmatpush1.bf16.msra.mxu0 0
        %2177 = vmatprep.subr.bf16.mxu0 0
        %2178 = vmatpush1.bf16.msra.mxu0 0
        %2179 = vmatprep.subr.bf16.mxu0 0
        %2180 = vmatpush1.bf16.msra.mxu0 0
        %2181 = vmatprep.subr.bf16.mxu0 0
        %2182 = vmatpush1.bf16.msra.mxu0 0
        %2183 = vmatprep.subr.bf16.mxu0 0
        %2184 = vmatpush1.bf16.msra.mxu0 0
        %2185 = vmatprep.subr.bf16.mxu0 0
        %2186 = vmatpush1.bf16.msra.mxu0 0
        %2187 = vmatprep.subr.bf16.mxu0 0
        %2188 = vmatpush1.bf16.msra.mxu0 0
        %2189 = vmatprep.subr.bf16.mxu0 0
        %2190 = vmatpush1.bf16.msra.mxu0 0
        %2191 = vmatprep.subr.bf16.mxu0 0
        %2192 = vmatpush1.bf16.msra.mxu0 0
        %2193 = vmatprep.subr.bf16.mxu0 0
        %2194 = vmatpush1.bf16.msra.mxu0 0
        %2195 = vmatprep.mubr.bf16.mxu0 0
        %2196 = vmatmul.mubr.bf16.gmra.mrb[0].mxu0 %v627
        %v2197 = vpop.f32.mrb[0].mxu0
        %v2198 = vadd.f32 0.0, %v2197
        %v2199 = vpop.f32.mrb[0].mxu0
        %v2200 = vpop.f32.mrb[0].mxu0
        %v2201 = vadd.f32 0.0, %v2200
        %v2202 = vpop.f32.mrb[0].mxu0
        %2203 = vdwg.mxu0
        %2204 = vmatprep.subr.bf16.mxu0 0
        %2205 = vmatpush1.bf16.msra.mxu0 %v2076
        %2206 = vmatprep.subr.bf16.mxu0 0
        %2207 = vmatpush1.bf16.msra.mxu0 0
        %2208 = vmatprep.subr.bf16.mxu0 0
        %2209 = vmatpush1.bf16.msra.mxu0 0
        %2210 = vmatprep.subr.bf16.mxu0 0
        %2211 = vmatpush1.bf16.msra.mxu0 0
        %2212 = vmatprep.subr.bf16.mxu0 0
        %2213 = vmatpush1.bf16.msra.mxu0 0
        %2214 = vmatprep.subr.bf16.mxu0 0
        %2215 = vmatpush1.bf16.msra.mxu0 0
        %2216 = vmatprep.subr.bf16.mxu0 0
        %2217 = vmatpush1.bf16.msra.mxu0 0
        %2218 = vmatprep.subr.bf16.mxu0 0
        %2219 = vmatpush1.bf16.msra.mxu0 0
        %2220 = vmatprep.subr.bf16.mxu0 0
        %2221 = vmatpush1.bf16.msra.mxu0 0
        %2222 = vmatprep.subr.bf16.mxu0 0
        %2223 = vmatpush1.bf16.msra.mxu0 0
        %2224 = vmatprep.subr.bf16.mxu0 0
        %2225 = vmatpush1.bf16.msra.mxu0 0
        %2226 = vmatprep.subr.bf16.mxu0 0
        %2227 = vmatpush1.bf16.msra.mxu0 0
        %2228 = vmatprep.subr.bf16.mxu0 0
        %2229 = vmatpush1.bf16.msra.mxu0 0
        %2230 = vmatprep.subr.bf16.mxu0 0
        %2231 = vmatpush1.bf16.msra.mxu0 0
        %2232 = vmatprep.subr.bf16.mxu0 0
        %2233 = vmatpush1.bf16.msra.mxu0 0
        %2234 = vmatprep.subr.bf16.mxu0 0
        %2235 = vmatpush1.bf16.msra.mxu0 0
        %2236 = vmatprep.mubr.bf16.mxu0 0
        %2237 = vmatmul.mubr.bf16.gmra.mrb[0].mxu0 %v676
        %v2238 = vpop.f32.mrb[0].mxu0
        %v2239 = vadd.f32 0.0, %v2238
        %v2240 = vpop.f32.mrb[0].mxu0
        %v2241 = vpop.f32.mrb[0].mxu0
        %v2242 = vadd.f32 0.0, %v2241
        %v2243 = vpop.f32.mrb[0].mxu0
        %2244 = vdwg.mxu0
        %2245 = vmatprep.subr.bf16.mxu0 0
        %2246 = vmatpush1.bf16.msra.mxu0 %v2077
        %2247 = vmatprep.subr.bf16.mxu0 0
        %2248 = vmatpush1.bf16.msra.mxu0 0
        %2249 = vmatprep.subr.bf16.mxu0 0
        %2250 = vmatpush1.bf16.msra.mxu0 0
        %2251 = vmatprep.subr.bf16.mxu0 0
        %2252 = vmatpush1.bf16.msra.mxu0 0
        %2253 = vmatprep.subr.bf16.mxu0 0
        %2254 = vmatpush1.bf16.msra.mxu0 0
        %2255 = vmatprep.subr.bf16.mxu0 0
        %2256 = vmatpush1.bf16.msra.mxu0 0
        %2257 = vmatprep.subr.bf16.mxu0 0
        %2258 = vmatpush1.bf16.msra.mxu0 0
        %2259 = vmatprep.subr.bf16.mxu0 0
        %2260 = vmatpush1.bf16.msra.mxu0 0
        %2261 = vmatprep.subr.bf16.mxu0 0
        %2262 = vmatpush1.bf16.msra.mxu0 0
        %2263 = vmatprep.subr.bf16.mxu0 0
        %2264 = vmatpush1.bf16.msra.mxu0 0
        %2265 = vmatprep.subr.bf16.mxu0 0
        %2266 = vmatpush1.bf16.msra.mxu0 0
        %2267 = vmatprep.subr.bf16.mxu0 0
        %2268 = vmatpush1.bf16.msra.mxu0 0
        %2269 = vmatprep.subr.bf16.mxu0 0
        %2270 = vmatpush1.bf16.msra.mxu0 0
        %2271 = vmatprep.subr.bf16.mxu0 0
        %2272 = vmatpush1.bf16.msra.mxu0 0
        %2273 = vmatprep.subr.bf16.mxu0 0
        %2274 = vmatpush1.bf16.msra.mxu0 0
        %2275 = vmatprep.subr.bf16.mxu0 0
        %2276 = vmatpush1.bf16.msra.mxu0 0
        %2277 = vmatprep.mubr.bf16.mxu0 0
        %2278 = vmatmul.mubr.bf16.gmra.mrb[0].mxu0 %v725
        %v2279 = vpop.f32.mrb[0].mxu0
        %v2280 = vadd.f32 0.0, %v2279
        %v2281 = vpop.f32.mrb[0].mxu0
        %v2282 = vpop.f32.mrb[0].mxu0
        %v2283 = vadd.f32 0.0, %v2282
        %v2284 = vpop.f32.mrb[0].mxu0
        %2285 = vdwg.mxu0
        %2286 = vmatprep.subr.bf16.mxu0 0
        %2287 = vmatpush1.bf16.msra.mxu0 %v2078
        %2288 = vmatprep.subr.bf16.mxu0 0
        %2289 = vmatpush1.bf16.msra.mxu0 0
        %2290 = vmatprep.subr.bf16.mxu0 0
        %2291 = vmatpush1.bf16.msra.mxu0 0
        %2292 = vmatprep.subr.bf16.mxu0 0
        %2293 = vmatpush1.bf16.msra.mxu0 0
        %2294 = vmatprep.subr.bf16.mxu0 0
        %2295 = vmatpush1.bf16.msra.mxu0 0
        %2296 = vmatprep.subr.bf16.mxu0 0
        %2297 = vmatpush1.bf16.msra.mxu0 0
        %2298 = vmatprep.subr.bf16.mxu0 0
        %2299 = vmatpush1.bf16.msra.mxu0 0
        %2300 = vmatprep.subr.bf16.mxu0 0
        %2301 = vmatpush1.bf16.msra.mxu0 0
        %2302 = vmatprep.subr.bf16.mxu0 0
        %2303 = vmatpush1.bf16.msra.mxu0 0
        %2304 = vmatprep.subr.bf16.mxu0 0
        %2305 = vmatpush1.bf16.msra.mxu0 0
        %2306 = vmatprep.subr.bf16.mxu0 0
        %2307 = vmatpush1.bf16.msra.mxu0 0
        %2308 = vmatprep.subr.bf16.mxu0 0
        %2309 = vmatpush1.bf16.msra.mxu0 0
        %2310 = vmatprep.subr.bf16.mxu0 0
        %2311 = vmatpush1.bf16.msra.mxu0 0
        %2312 = vmatprep.subr.bf16.mxu0 0
        %2313 = vmatpush1.bf16.msra.mxu0 0
        %2314 = vmatprep.subr.bf16.mxu0 0
        %2315 = vmatpush1.bf16.msra.mxu0 0
        %2316 = vmatprep.subr.bf16.mxu0 0
        %2317 = vmatpush1.bf16.msra.mxu0 0
        %2318 = vmatprep.mubr.bf16.mxu0 0
        %2319 = vmatmul.mubr.bf16.gmra.mrb[0].mxu0 %v774
        %v2320 = vpop.f32.mrb[0].mxu0
        %v2321 = vadd.f32 0.0, %v2320
        %v2322 = vpop.f32.mrb[0].mxu0
        %v2323 = vpop.f32.mrb[0].mxu0
        %v2324 = vadd.f32 0.0, %v2323
        %v2325 = vpop.f32.mrb[0].mxu0
        %2326 = vdwg.mxu0
        %2327 = vmatprep.subr.bf16.mxu0 0
        %2328 = vmatpush1.bf16.msra.mxu0 %v2079
        %2329 = vmatprep.subr.bf16.mxu0 0
        %2330 = vmatpush1.bf16.msra.mxu0 0
        %2331 = vmatprep.subr.bf16.mxu0 0
        %2332 = vmatpush1.bf16.msra.mxu0 0
        %2333 = vmatprep.subr.bf16.mxu0 0
        %2334 = vmatpush1.bf16.msra.mxu0 0
        %2335 = vmatprep.subr.bf16.mxu0 0
        %2336 = vmatpush1.bf16.msra.mxu0 0
        %2337 = vmatprep.subr.bf16.mxu0 0
        %2338 = vmatpush1.bf16.msra.mxu0 0
        %2339 = vmatprep.subr.bf16.mxu0 0
        %2340 = vmatpush1.bf16.msra.mxu0 0
        %2341 = vmatprep.subr.bf16.mxu0 0
        %2342 = vmatpush1.bf16.msra.mxu0 0
        %2343 = vmatprep.subr.bf16.mxu0 0
        %2344 = vmatpush1.bf16.msra.mxu0 0
        %2345 = vmatprep.subr.bf16.mxu0 0
        %2346 = vmatpush1.bf16.msra.mxu0 0
        %2347 = vmatprep.subr.bf16.mxu0 0
        %2348 = vmatpush1.bf16.msra.mxu0 0
        %2349 = vmatprep.subr.bf16.mxu0 0
        %2350 = vmatpush1.bf16.msra.mxu0 0
        %2351 = vmatprep.subr.bf16.mxu0 0
        %2352 = vmatpush1.bf16.msra.mxu0 0
        %2353 = vmatprep.subr.bf16.mxu0 0
        %2354 = vmatpush1.bf16.msra.mxu0 0
        %2355 = vmatprep.subr.bf16.mxu0 0
        %2356 = vmatpush1.bf16.msra.mxu0 0
        %2357 = vmatprep.subr.bf16.mxu0 0
        %2358 = vmatpush1.bf16.msra.mxu0 0
        %2359 = vmatprep.mubr.bf16.mxu0 0
        %2360 = vmatmul.mubr.bf16.gmra.mrb[0].mxu0 %v823
        %v2361 = vpop.f32.mrb[0].mxu0
        %v2362 = vadd.f32 0.0, %v2361
        %v2363 = vpop.f32.mrb[0].mxu0
        %v2364 = vpop.f32.mrb[0].mxu0
        %v2365 = vadd.f32 0.0, %v2364
        %v2366 = vpop.f32.mrb[0].mxu0
        %2367 = vdwg.mxu0
        %2368 = vmatprep.subr.bf16.mxu0 0
        %2369 = vmatpush1.bf16.msra.mxu0 %v2080
        %2370 = vmatprep.subr.bf16.mxu0 0
        %2371 = vmatpush1.bf16.msra.mxu0 0
        %2372 = vmatprep.subr.bf16.mxu0 0
        %2373 = vmatpush1.bf16.msra.mxu0 0
        %2374 = vmatprep.subr.bf16.mxu0 0
        %2375 = vmatpush1.bf16.msra.mxu0 0
        %2376 = vmatprep.subr.bf16.mxu0 0
        %2377 = vmatpush1.bf16.msra.mxu0 0
        %2378 = vmatprep.subr.bf16.mxu0 0
        %2379 = vmatpush1.bf16.msra.mxu0 0
        %2380 = vmatprep.subr.bf16.mxu0 0
        %2381 = vmatpush1.bf16.msra.mxu0 0
        %2382 = vmatprep.subr.bf16.mxu0 0
        %2383 = vmatpush1.bf16.msra.mxu0 0
        %2384 = vmatprep.subr.bf16.mxu0 0
        %2385 = vmatpush1.bf16.msra.mxu0 0
        %2386 = vmatprep.subr.bf16.mxu0 0
        %2387 = vmatpush1.bf16.msra.mxu0 0
        %2388 = vmatprep.subr.bf16.mxu0 0
        %2389 = vmatpush1.bf16.msra.mxu0 0
        %2390 = vmatprep.subr.bf16.mxu0 0
        %2391 = vmatpush1.bf16.msra.mxu0 0
        %2392 = vmatprep.subr.bf16.mxu0 0
        %2393 = vmatpush1.bf16.msra.mxu0 0
        %2394 = vmatprep.subr.bf16.mxu0 0
        %2395 = vmatpush1.bf16.msra.mxu0 0
        %2396 = vmatprep.subr.bf16.mxu0 0
        %2397 = vmatpush1.bf16.msra.mxu0 0
        %2398 = vmatprep.subr.bf16.mxu0 0
        %2399 = vmatpush1.bf16.msra.mxu0 0
        %2400 = vmatprep.mubr.bf16.mxu0 0
        %2401 = vmatmul.mubr.bf16.gmra.mrb[0].mxu0 %v872
        %v2402 = vpop.f32.mrb[0].mxu0
        %v2403 = vadd.f32 0.0, %v2402
        %v2404 = vpop.f32.mrb[0].mxu0
        %v2405 = vpop.f32.mrb[0].mxu0
        %v2406 = vadd.f32 0.0, %v2405
        %v2407 = vpop.f32.mrb[0].mxu0
        %2408 = vdwg.mxu0
        %v2409 = vmax.f32 %v2116, 0.0
        %v2410 = vmax.f32 %v2119, 0.0
        %v2411 = vmax.f32 %v2157, 0.0
        %v2412 = vmax.f32 %v2160, 0.0
        %v2413 = vmax.f32 %v2198, 0.0
        %v2414 = vmax.f32 %v2201, 0.0
        %v2415 = vmax.f32 %v2239, 0.0
        %v2416 = vmax.f32 %v2242, 0.0
        %v2417 = vmax.f32 %v2280, 0.0
        %v2418 = vmax.f32 %v2283, 0.0
        %v2419 = vmax.f32 %v2321, 0.0
        %v2420 = vmax.f32 %v2324, 0.0
        %v2421 = vmax.f32 %v2362, 0.0
        %v2422 = vmax.f32 %v2365, 0.0
        %v2423 = vmax.f32 %v2403, 0.0
        %v2424 = vmax.f32 %v2406, 0.0
        %v2425 = vlaneseq
        %v2426 = vshrl.u32 %v2425, 7
        %v2427 = vlaneseq
        %v2428 = vand.u32 %v2427, 127
        %v2429 = vmul.u32 %v2426, 16
        %vm2430 = vcmp.ge.s32.totalorder %v2428, %v2429
        %v2431 = vadd.s32 %v2426, 1
        %v2432 = vmul.u32 %v2431, 16
        %vm2433 = vcmp.lt.s32.totalorder %v2428, %v2432
        %vm2434 = vmand %vm2430, %vm2433
        %v2435 = vsel %vm2434, 1, 0
        %v2436 = vcvt.s32.f32 %v2435
        %v2437 = vpack.c.bf16 %v2436, %v2436
        %v2438 = vpack.c.bf16 %v2410, %v2409
        %v2439 = vpack.c.bf16 %v2412, %v2411
        %v2440 = vpack.c.bf16 %v2414, %v2413
        %v2441 = vpack.c.bf16 %v2416, %v2415
        %v2442 = vpack.c.bf16 %v2418, %v2417
        %v2443 = vpack.c.bf16 %v2420, %v2419
        %v2444 = vpack.c.bf16 %v2422, %v2421
        %v2445 = vpack.c.bf16 %v2424, %v2423
        %2446 = vmatprep.subr.bf16.mxu0 0
        %2447 = vmatpush1.bf16.msra.mxu0 %v2438
        %2448 = vmatprep.subr.bf16.mxu0 0
        %2449 = vmatpush1.bf16.msra.mxu0 %v2439
        %2450 = vmatprep.subr.bf16.mxu0 0
        %2451 = vmatpush1.bf16.msra.mxu0 %v2440
        %2452 = vmatprep.subr.bf16.mxu0 0
        %2453 = vmatpush1.bf16.msra.mxu0 %v2441
        %2454 = vmatprep.subr.bf16.mxu0 0
        %2455 = vmatpush1.bf16.msra.mxu0 %v2442
        %2456 = vmatprep.subr.bf16.mxu0 0
        %2457 = vmatpush1.bf16.msra.mxu0 %v2443
        %2458 = vmatprep.subr.bf16.mxu0 0
        %2459 = vmatpush1.bf16.msra.mxu0 %v2444
        %2460 = vmatprep.subr.bf16.mxu0 0
        %2461 = vmatpush1.bf16.msra.mxu0 %v2445
        %2462 = vmatprep.subr.bf16.mxu0 0
        %2463 = vmatpush1.bf16.msra.mxu0 0
        %2464 = vmatprep.subr.bf16.mxu0 0
        %2465 = vmatpush1.bf16.msra.mxu0 0
        %2466 = vmatprep.subr.bf16.mxu0 0
        %2467 = vmatpush1.bf16.msra.mxu0 0
        %2468 = vmatprep.subr.bf16.mxu0 0
        %2469 = vmatpush1.bf16.msra.mxu0 0
        %2470 = vmatprep.subr.bf16.mxu0 0
        %2471 = vmatpush1.bf16.msra.mxu0 0
        %2472 = vmatprep.subr.bf16.mxu0 0
        %2473 = vmatpush1.bf16.msra.mxu0 0
        %2474 = vmatprep.subr.bf16.mxu0 0
        %2475 = vmatpush1.bf16.msra.mxu0 0
        %2476 = vmatprep.subr.bf16.mxu0 0
        %2477 = vmatpush1.bf16.msra.mxu0 0
        %2478 = vmatprep.mubr.bf16.mxu0 0
        %2479 = vmatmul.mubr.bf16.gmra.mrb[0].mxu0 %v2437
        %v2480 = vpop.f32.mrb[0].mxu0
        %v2481 = vadd.f32 0.0, %v2480
        %v2482 = vpop.f32.mrb[0].mxu0
        %v2483 = vpop.f32.mrb[0].mxu0
        %v2484 = vpop.f32.mrb[0].mxu0
        %2485 = vdwg.mxu0
        %vm2486 = vcmask 261120
        %2487 = vst.msk [vmem:[%s278] sm:$0xff] %vm2486, %v2481
        %s2488 = sand.u32 %s165, 1
        %s2489 = scalar_lea.sflag [#allocation4], %s2488
        %s2490 = sand.u32 %s165, 1
        %s2491 = smul.addr %s2490, 8
        %s2492 = scalar_lea.vmem [#allocation5], %s2491
        // Predicated region
        $region49: #{tpu_custom_call.1} parent=43 // pred_check
          %p2493 = pneg %p175
        $region50: #{tpu_custom_call.1} parent=43 // pred_check_branch
          %2495 = sbr.rel (%p2493) target = $region52
        $region51: #{tpu_custom_call.1} parent=43 // pred_region
          %s2497 = ssub.s32 128, 128
          %2498 = vsyncadd %s2489, %s2497
          %s2499 = smul.addr %s21, 128
          %s2500 = scalar_lea.hbm %s6, %s2499
          %s2502 = sshll.u32 %s2492, 4
          %s2503 = int_to_ptr.vmem [resolvable:$true] %s2502
          %2505 = dma.vmem_to_hbm [thread:$0]  %s2503, 128, %s2500, %s2489
        $region52: #{tpu_custom_call.1} parent=43 // pred_fallthru
          _
      $region44: #{tpu_custom_call.1} parent=5 // pred_fallthru
        _
      %p2506 = scmp.le.s32.totalorder 2, %s16
      // Predicated region
      $region53: #{tpu_custom_call.1} parent=5 // pred_check
        %p2507 = pneg %p2506
      $region54: #{tpu_custom_call.1} parent=5 // pred_check_branch
        %2509 = sbr.rel (%p2507) target = $region56
      $region55: #{tpu_custom_call.1} parent=5 // pred_region
        %s2510 = ssub.s32 %s16, 2
        // Predicated region
        $region57: #{tpu_custom_call.1} parent=55 // pred_check
          %p2511 = pneg %p181
        $region58: #{tpu_custom_call.1} parent=55 // pred_check_branch
          %2513 = sbr.rel (%p2511) target = $region60
        $region59: #{tpu_custom_call.1} parent=55 // pred_region
          %s2514 = sand.u32 %s166, 1
          %s2515 = scalar_lea.sflag [#allocation4], %s2514
          %s2516 = sand.u32 %s166, 1
          %s2517 = smul.addr %s2516, 8
          %s2518 = scalar_lea.vmem [#allocation5], %s2517
          %2519 = dma.done %s2515, 128
        $region60: #{tpu_custom_call.1} parent=55 // pred_fallthru
          _
      $region56: #{tpu_custom_call.1} parent=5 // pred_fallthru
        _
    $region6: #{tpu_custom_call.1} parent=1 // loop_footer
      %s20 = sadd.s32 1, %s16
    $region7: #{tpu_custom_call.1} parent=1 // loop_footer_branch
      %15 = sbr.rel target = $region3
    $region8: #{tpu_custom_call.1} parent=1 // loop_exit
      _
    %2520 = vsyncpa [#allocation3], 1
    %s2521 = scalar_lea.sflag [#allocation3], 1
    %2522 = vsyncpa %s2521, 1
    %2523 = vsyncpa [#allocation4], 1
    %s2524 = scalar_lea.sflag [#allocation4], 1
    %2525 = vsyncpa %s2524, 1

</llo_original>
